<compile_context>
chip_gen: v6e
topology: v6e:2x2x1
jax: 0.10.0
libtpu: 0.0.40
codegen_flags: <defaults>
</compile_context>

<pallas_src>
import functools
import math

import jax
import jax.numpy as jnp
from jax import lax
from jax.experimental import pallas as pl
from jax.experimental.pallas import tpu as pltpu


def _round_up(a, b):
    return (a + b - 1) // b * b


def _transformer_layer_kernel(x_q_ref, k_ref, v_ref, wq_ref,
                              w1_ref, b1_ref, w2_ref, b2_ref,
                              out_ref, attn_ref, *, t_real):
    x_q = x_q_ref[...]                                   # (TQ, Dp) f32 query tile (residual path)
    x_q_b = x_q.astype(jnp.bfloat16)

    # Q projection for this tile only; the 1/sqrt(d_model) scale is folded into wq (wrapper).
    q = jnp.dot(x_q_b, wq_ref[...], preferred_element_type=jnp.float32)      # (TQ, Di)

    # Scores vs. the precomputed resident bf16 K: contract last dims (no k.T materialization).
    s = lax.dot_general(q.astype(jnp.bfloat16), k_ref[...],
                        (((1,), (1,)), ((), ())),
                        preferred_element_type=jnp.float32)                  # (TQ, Tp)

    # Mask padded key columns (t_real is a trace-time constant).
    if t_real < s.shape[1]:
        col = lax.broadcasted_iota(jnp.int32, s.shape, 1)
        s = jnp.where(col < t_real, s, -1e30)

    # Numerically-stable softmax over the key axis (== reference softmax(dim=1) on 2-D scores).
    m = jnp.max(s, axis=-1, keepdims=True)
    e = jnp.exp(s - m)
    denom = jnp.sum(e, axis=-1, keepdims=True)
    p = e * pl.reciprocal(denom, approx=True)            # EUP reciprocal (rows sum to 1 +- ~1e-3)
    attn_ref[...] = p.astype(attn_ref.dtype)             # bf16 writeback (halves attn HBM bytes)

    # Attention output + residual (residual kept in f32).
    ctx = jnp.dot(p.astype(jnp.bfloat16), v_ref[...],
                  preferred_element_type=jnp.float32)                        # (TQ, Di == Dp)
    attn = ctx + x_q

    # Feed-forward: linear1 -> exact (erf) GELU -> linear2, residual with `attn`.
    h = jnp.dot(attn.astype(jnp.bfloat16), w1_ref[...],
                preferred_element_type=jnp.float32) + b1_ref[...]
    g = 0.5 * h * (1.0 + lax.erf(h * (1.0 / math.sqrt(2.0))))                # PyTorch default GELU
    out = jnp.dot(g.astype(jnp.bfloat16), w2_ref[...],
                  preferred_element_type=jnp.float32) + b2_ref[...]
    out_ref[...] = (out + attn).astype(out_ref.dtype)


def transformer_layer(x, params, *, tq=128):
    """Pallas forward pass. x: (T, d_model). Returns (linear_out (T, d_model), attention (T, T))."""
    T, d_model = x.shape
    d_internal = params["wk"].shape[0]
    # The reference module's residual adds only type-check when d_internal == d_model.
    assert d_internal == d_model, "TransformerLayer requires d_internal == d_model"

    # Padded, lane-dense shapes (wrapper-side layout plumbing).
    TQ = tq
    Tp = _round_up(max(T, TQ), TQ)          # multiple of TQ (>=128) -> lane-dense attn output
    Dp = _round_up(max(d_model, 128), 128)
    Di = _round_up(max(d_internal, 128), 128)
    grid_n = Tp // TQ

    scale = 1.0 / math.sqrt(d_model)

    def pad2(a, r, c):
        a = jnp.asarray(a, jnp.float32)
        return jnp.zeros((r, c), jnp.float32).at[:a.shape[0], :a.shape[1]].set(a)

    x_pad = pad2(x, Tp, Dp)

    # Pre-transposed ([in, out]) weights; score scale folded into Wq.
    wq_t = pad2(params["wq"].T * scale, Dp, Di).astype(jnp.bfloat16)
    wk_t = pad2(params["wk"].T, Dp, Di)
    wv_t = pad2(params["wv"].T, Dp, Di)
    w1_t = pad2(params["w1"].T, Dp, Di).astype(jnp.bfloat16)
    w2_t = pad2(params["w2"].T, Di, Dp).astype(jnp.bfloat16)
    b1 = pad2(params["b1"].reshape(1, -1), 1, Di)                            # f32 biases
    b2 = pad2(params["b2"].reshape(1, -1), 1, Dp)

    # Hoisted K/V projection: computed ONCE here (one wide f32 matmul), consumed by every
    # grid step as resident bf16 operands (the kernel only ever used them in bf16 anyway).
    kv = jnp.dot(x_pad, jnp.concatenate([wk_t, wv_t], axis=1))               # (Tp, 2*Di)
    k_full = kv[:, :Di].astype(jnp.bfloat16)
    v_full = kv[:, Di:].astype(jnp.bfloat16)

    kernel = functools.partial(_transformer_layer_kernel, t_real=T)

    def resident(a):
        # Constant block index across the grid -> single-buffered (halves resident VMEM).
        return pl.BlockSpec(a.shape, lambda i: (0,) * a.ndim,
                            pipeline_mode=pl.Buffered(1))

    # With residents shrunk, buffer the short streaming steps more deeply.
    buf_depth = min(3, grid_n + 1)
    stream_mode = pl.Buffered(buf_depth)

    # Explicit VMEM budget (derived from actual buffers, capped for v7x's 64 MiB).
    resident_bytes = (2 * (k_full.size + v_full.size + wq_t.size + w1_t.size + w2_t.size)
                      + 4 * (b1.size + b2.size))
    stream_bytes = buf_depth * (2 * TQ * Dp * 4 + TQ * Tp * 2)               # x_q + out + attn
    temp_bytes = 8 * TQ * Tp * 4 + 8 * TQ * max(Dp, Di) * 4                  # f32 temporaries
    vmem_limit = int(min(max(2 * (resident_bytes + stream_bytes + temp_bytes), 32 << 20),
                         64 << 20))

    # Advisory cost estimate (KV projection no longer inside the kernel).
    flops = grid_n * (2 * TQ * Dp * Di          # q projection
                      + 2 * TQ * Di * Tp        # scores
                      + 2 * TQ * Tp * Di        # p @ v
                      + 2 * TQ * Dp * Di        # ffn linear1
                      + 2 * TQ * Di * Dp)       # ffn linear2
    transcendentals = grid_n * (TQ * Tp + TQ * Di + TQ)
    bytes_accessed = int(4 * Tp * Dp                                          # x read
                         + 2 * (k_full.size + v_full.size
                                + wq_t.size + w1_t.size + w2_t.size)
                         + 4 * (b1.size + b2.size)
                         + 4 * Tp * Dp + 2 * Tp * Tp)                         # out + attn writes

    out_pad, attn_pad = pl.pallas_call(
        kernel,
        out_shape=(
            jax.ShapeDtypeStruct((Tp, Dp), jnp.float32),
            jax.ShapeDtypeStruct((Tp, Tp), jnp.bfloat16),
        ),
        grid_spec=pltpu.PrefetchScalarGridSpec(
            num_scalar_prefetch=0,
            grid=(grid_n,),
            in_specs=[
                pl.BlockSpec((TQ, Dp), lambda i: (i, 0),
                             pipeline_mode=stream_mode),    # x, per query tile (f32, residual)
                resident(k_full), resident(v_full),         # precomputed K/V (bf16, resident)
                resident(wq_t),
                resident(w1_t), resident(b1),
                resident(w2_t), resident(b2),
            ],
            out_specs=(
                pl.BlockSpec((TQ, Dp), lambda i: (i, 0), pipeline_mode=stream_mode),
                pl.BlockSpec((TQ, Tp), lambda i: (i, 0), pipeline_mode=stream_mode),
            ),
        ),
        compiler_params=pltpu.CompilerParams(
            dimension_semantics=("parallel",),
            vmem_limit_bytes=vmem_limit),
        cost_estimate=pl.CostEstimate(flops=flops,
                                      transcendentals=transcendentals,
                                      bytes_accessed=bytes_accessed),
    )(x_pad, k_full, v_full, wq_t, w1_t, b1, w2_t, b2)

    return out_pad[:T, :d_model], attn_pad[:T, :T].astype(jnp.float32)


def transformer_layer_ref(x, params):
    """Pure-JAX f32 reference, mirrors the PyTorch forward exactly."""
    d_model = x.shape[-1]
    k = x @ params["wk"].T
    q = x @ params["wq"].T
    v = x @ params["wv"].T
    scores = (q @ k.T) / math.sqrt(d_model)
    p = jax.nn.softmax(scores, axis=1)
    attn = p @ v + x
    h = attn @ params["w1"].T + params["b1"]
    g = jax.nn.gelu(h, approximate=False)
    out = g @ params["w2"].T + params["b2"] + attn
    return out, p


def init_params(key, d_model, d_internal):
    """Deterministic init mimicking nn.Linear's uniform(-1/sqrt(fan_in), 1/sqrt(fan_in))."""
    ks = jax.random.split(key, 8)

    def u(k, shape, fan_in):
        bound = 1.0 / math.sqrt(fan_in)
        return jax.random.uniform(k, shape, jnp.float32, -bound, bound)

    return {
        "wk": u(ks[0], (d_internal, d_model), d_model),
        "wq": u(ks[1], (d_internal, d_model), d_model),
        "wv": u(ks[2], (d_internal, d_model), d_model),
        "w1": u(ks[3], (d_internal, d_model), d_model),
        "b1": u(ks[4], (d_internal,), d_model),
        "w2": u(ks[5], (d_model, d_model), d_model),
        "b2": u(ks[6], (d_model,), d_model),
    }


if __name__ == "__main__":
    T = 8
    d_model = 32
    d_internal = 32  # must equal d_model for the reference module's residual adds to be valid

    key = jax.random.PRNGKey(0)
    kx, kp = jax.random.split(key)
    x = jax.random.normal(kx, (T, d_model), jnp.float32)
    params = init_params(kp, d_model, d_internal)

    out, attn = transformer_layer(x, params)
    out = jax.block_until_ready(out)
    attn = jax.block_until_ready(attn)

    out_ref, attn_ref = transformer_layer_ref(x, params)
    assert out.shape == (T, d_model) and attn.shape == (T, T)
    # bf16 matmul operands, bf16 attention writeback and approx reciprocal -> loose-ish tolerance.
    assert jnp.allclose(out, out_ref, rtol=2e-2, atol=2e-2)
    assert jnp.allclose(attn, attn_ref, rtol=2e-2, atol=2e-2)

    print("KERNEL_OK")
</pallas_src>

<mosaic_0001>
module attributes {stable_mosaic.version = 11 : i64} {
  func.func @_transformer_layer_kernel(%arg0: i32, %arg1: memref<128x128xf32, #tpu.memory_space<vmem>>, %arg2: memref<128x128xbf16, #tpu.memory_space<vmem>>, %arg3: memref<128x128xbf16, #tpu.memory_space<vmem>>, %arg4: memref<128x128xbf16, #tpu.memory_space<vmem>>, %arg5: memref<128x128xbf16, #tpu.memory_space<vmem>>, %arg6: memref<1x128xf32, #tpu.memory_space<vmem>>, %arg7: memref<128x128xbf16, #tpu.memory_space<vmem>>, %arg8: memref<1x128xf32, #tpu.memory_space<vmem>>, %arg9: memref<128x128xf32, #tpu.memory_space<vmem>>, %arg10: memref<128x128xbf16, #tpu.memory_space<vmem>>) attributes {dimension_semantics = [#tpu.dimension_semantics<parallel>], iteration_bounds = array<i64: 1>, scalar_prefetch = 0 : i64, scratch_operands = 0 : i64, tpu.core_type = #tpu.core_type<tc>, window_params = [{pipeline_mode = #tpu.pipeline_mode<double_buffered>, transform_indices = @transform_0, window_bounds = array<i64: 128, 128>}, {pipeline_mode = #tpu.pipeline_mode<synchronous>, transform_indices = @transform_1, window_bounds = array<i64: 128, 128>}, {pipeline_mode = #tpu.pipeline_mode<synchronous>, transform_indices = @transform_2, window_bounds = array<i64: 128, 128>}, {pipeline_mode = #tpu.pipeline_mode<synchronous>, transform_indices = @transform_3, window_bounds = array<i64: 128, 128>}, {pipeline_mode = #tpu.pipeline_mode<synchronous>, transform_indices = @transform_4, window_bounds = array<i64: 128, 128>}, {pipeline_mode = #tpu.pipeline_mode<synchronous>, transform_indices = @transform_5, window_bounds = array<i64: 1, 128>}, {pipeline_mode = #tpu.pipeline_mode<synchronous>, transform_indices = @transform_6, window_bounds = array<i64: 128, 128>}, {pipeline_mode = #tpu.pipeline_mode<synchronous>, transform_indices = @transform_7, window_bounds = array<i64: 1, 128>}, {pipeline_mode = #tpu.pipeline_mode<double_buffered>, transform_indices = @transform_8, window_bounds = array<i64: 128, 128>}, {pipeline_mode = #tpu.pipeline_mode<double_buffered>, transform_indices = @transform_9, window_bounds = array<i64: 128, 128>}]} {
    %c0 = arith.constant 0 : index
    %c0_0 = arith.constant 0 : index
    %0 = vector.load %arg1[%c0, %c0_0] : memref<128x128xf32, #tpu.memory_space<vmem>>, vector<128x128xf32>
    %1 = arith.truncf %0 : vector<128x128xf32> to vector<128x128xbf16>
    %c0_1 = arith.constant 0 : index
    %c0_2 = arith.constant 0 : index
    %2 = vector.load %arg4[%c0_1, %c0_2] : memref<128x128xbf16, #tpu.memory_space<vmem>>, vector<128x128xbf16>
    %cst = arith.constant dense<0.000000e+00> : vector<128x128xf32>
    %3 = tpu.matmul %1, %2, %cst {dimension_numbers = #tpu.dot_dimension_numbers<[1], [0], [0], [1], [0, 0, 1, 1], [], []>} : vector<128x128xbf16>, vector<128x128xbf16>, vector<128x128xf32> -> vector<128x128xf32>
    %4 = arith.truncf %3 : vector<128x128xf32> to vector<128x128xbf16>
    %c0_3 = arith.constant 0 : index
    %c0_4 = arith.constant 0 : index
    %5 = vector.load %arg2[%c0_3, %c0_4] : memref<128x128xbf16, #tpu.memory_space<vmem>>, vector<128x128xbf16>
    %cst_5 = arith.constant dense<0.000000e+00> : vector<128x128xf32>
    %6 = tpu.matmul %4, %5, %cst_5 {dimension_numbers = #tpu.dot_dimension_numbers<[1], [1], [0], [0], [0, 0, 1, 0], [], []>} : vector<128x128xbf16>, vector<128x128xbf16>, vector<128x128xf32> -> vector<128x128xf32>
    %7 = tpu.iota {dimensions = array<i32: 1>} : vector<128x128xi32>
    %c8_i32 = arith.constant 8 : i32
    %8 = vector.broadcast %c8_i32 : i32 to vector<128x128xi32>
    %9 = arith.cmpi slt, %7, %8 : vector<128x128xi32>
    %cst_6 = arith.constant -1.000000e+30 : f32
    %10 = vector.broadcast %cst_6 : f32 to vector<128x128xf32>
    %11 = arith.select %9, %6, %10 : vector<128x128xi1>, vector<128x128xf32>
    %cst_7 = arith.constant dense<0xFF800000> : vector<128xf32>
    %12 = vector.multi_reduction <maximumf>, %11, %cst_7 [1] : vector<128x128xf32> to vector<128xf32>
    %13 = vector.shape_cast %12 : vector<128xf32> to vector<128x1xf32>
    %14 = vector.broadcast %13 : vector<128x1xf32> to vector<128x128xf32>
    %15 = arith.subf %11, %14 : vector<128x128xf32>
    %16 = math.exp %15 : vector<128x128xf32>
    %cst_8 = arith.constant dense<0.000000e+00> : vector<128xf32>
    %17 = vector.multi_reduction <add>, %16, %cst_8 [1] : vector<128x128xf32> to vector<128xf32>
    %18 = vector.shape_cast %17 : vector<128xf32> to vector<128x1xf32>
    %19 = tpu.reciprocal %18 {approx = true} : vector<128x1xf32> -> vector<128x1xf32>
    %20 = vector.broadcast %19 : vector<128x1xf32> to vector<128x128xf32>
    %21 = arith.mulf %16, %20 : vector<128x128xf32>
    %22 = arith.truncf %21 : vector<128x128xf32> to vector<128x128xbf16>
    %c0_9 = arith.constant 0 : index
    %c0_10 = arith.constant 0 : index
    %23 = vector.load %arg10[%c0_9, %c0_10] : memref<128x128xbf16, #tpu.memory_space<vmem>>, vector<128x128xbf16>
    tpu.vector_store %arg10[%c0_9, %c0_10], %22 {strides = array<i32>} : memref<128x128xbf16, #tpu.memory_space<vmem>>, vector<128x128xbf16>,
    %24 = arith.truncf %21 : vector<128x128xf32> to vector<128x128xbf16>
    %c0_11 = arith.constant 0 : index
    %c0_12 = arith.constant 0 : index
    %25 = vector.load %arg3[%c0_11, %c0_12] : memref<128x128xbf16, #tpu.memory_space<vmem>>, vector<128x128xbf16>
    %cst_13 = arith.constant dense<0.000000e+00> : vector<128x128xf32>
    %26 = tpu.matmul %24, %25, %cst_13 {dimension_numbers = #tpu.dot_dimension_numbers<[1], [0], [0], [1], [0, 0, 1, 1], [], []>} : vector<128x128xbf16>, vector<128x128xbf16>, vector<128x128xf32> -> vector<128x128xf32>
    %27 = arith.addf %26, %0 : vector<128x128xf32>
    %28 = arith.truncf %27 : vector<128x128xf32> to vector<128x128xbf16>
    %c0_14 = arith.constant 0 : index
    %c0_15 = arith.constant 0 : index
    %29 = vector.load %arg5[%c0_14, %c0_15] : memref<128x128xbf16, #tpu.memory_space<vmem>>, vector<128x128xbf16>
    %cst_16 = arith.constant dense<0.000000e+00> : vector<128x128xf32>
    %30 = tpu.matmul %28, %29, %cst_16 {dimension_numbers = #tpu.dot_dimension_numbers<[1], [0], [0], [1], [0, 0, 1, 1], [], []>} : vector<128x128xbf16>, vector<128x128xbf16>, vector<128x128xf32> -> vector<128x128xf32>
    %c0_17 = arith.constant 0 : index
    %c0_18 = arith.constant 0 : index
    %31 = vector.load %arg6[%c0_17, %c0_18] : memref<1x128xf32, #tpu.memory_space<vmem>>, vector<1x128xf32>
    %32 = vector.broadcast %31 : vector<1x128xf32> to vector<128x128xf32>
    %33 = arith.addf %30, %32 : vector<128x128xf32>
    %cst_19 = arith.constant 5.000000e-01 : f32
    %34 = vector.broadcast %cst_19 : f32 to vector<128x128xf32>
    %35 = arith.mulf %34, %33 : vector<128x128xf32>
    %cst_20 = arith.constant 0.707106769 : f32
    %36 = vector.broadcast %cst_20 : f32 to vector<128x128xf32>
    %37 = arith.mulf %33, %36 : vector<128x128xf32>
    %38 = math.erf %37 : vector<128x128xf32>
    %cst_21 = arith.constant 1.000000e+00 : f32
    %39 = vector.broadcast %cst_21 : f32 to vector<128x128xf32>
    %40 = arith.addf %39, %38 : vector<128x128xf32>
    %41 = arith.mulf %35, %40 : vector<128x128xf32>
    %42 = arith.truncf %41 : vector<128x128xf32> to vector<128x128xbf16>
    %c0_22 = arith.constant 0 : index
    %c0_23 = arith.constant 0 : index
    %43 = vector.load %arg7[%c0_22, %c0_23] : memref<128x128xbf16, #tpu.memory_space<vmem>>, vector<128x128xbf16>
    %cst_24 = arith.constant dense<0.000000e+00> : vector<128x128xf32>
    %44 = tpu.matmul %42, %43, %cst_24 {dimension_numbers = #tpu.dot_dimension_numbers<[1], [0], [0], [1], [0, 0, 1, 1], [], []>} : vector<128x128xbf16>, vector<128x128xbf16>, vector<128x128xf32> -> vector<128x128xf32>
    %c0_25 = arith.constant 0 : index
    %c0_26 = arith.constant 0 : index
    %45 = vector.load %arg8[%c0_25, %c0_26] : memref<1x128xf32, #tpu.memory_space<vmem>>, vector<1x128xf32>
    %46 = vector.broadcast %45 : vector<1x128xf32> to vector<128x128xf32>
    %47 = arith.addf %44, %46 : vector<128x128xf32>
    %48 = arith.addf %47, %27 : vector<128x128xf32>
    %c0_27 = arith.constant 0 : index
    %c0_28 = arith.constant 0 : index
    %49 = vector.load %arg9[%c0_27, %c0_28] : memref<128x128xf32, #tpu.memory_space<vmem>>, vector<128x128xf32>
    tpu.vector_store %arg9[%c0_27, %c0_28], %48 {strides = array<i32>} : memref<128x128xf32, #tpu.memory_space<vmem>>, vector<128x128xf32>,
    return
  }
  func.func @transform_0(%arg0: i32) -> (i32, i32) {
    %c0_i32 = arith.constant 0 : i32
    %c0_i32_0 = arith.constant 0 : i32
    return %arg0, %c0_i32 : i32, i32
  }
  func.func @transform_1(%arg0: i32) -> (i32, i32) {
    %c0_i32 = arith.constant 0 : i32
    %c0_i32_0 = arith.constant 0 : i32
    %c0_i32_1 = arith.constant 0 : i32
    return %c0_i32, %c0_i32_0 : i32, i32
  }
  func.func @transform_2(%arg0: i32) -> (i32, i32) {
    %c0_i32 = arith.constant 0 : i32
    %c0_i32_0 = arith.constant 0 : i32
    %c0_i32_1 = arith.constant 0 : i32
    return %c0_i32, %c0_i32_0 : i32, i32
  }
  func.func @transform_3(%arg0: i32) -> (i32, i32) {
    %c0_i32 = arith.constant 0 : i32
    %c0_i32_0 = arith.constant 0 : i32
    %c0_i32_1 = arith.constant 0 : i32
    return %c0_i32, %c0_i32_0 : i32, i32
  }
  func.func @transform_4(%arg0: i32) -> (i32, i32) {
    %c0_i32 = arith.constant 0 : i32
    %c0_i32_0 = arith.constant 0 : i32
    %c0_i32_1 = arith.constant 0 : i32
    return %c0_i32, %c0_i32_0 : i32, i32
  }
  func.func @transform_5(%arg0: i32) -> (i32, i32) {
    %c0_i32 = arith.constant 0 : i32
    %c0_i32_0 = arith.constant 0 : i32
    %c0_i32_1 = arith.constant 0 : i32
    return %c0_i32, %c0_i32_0 : i32, i32
  }
  func.func @transform_6(%arg0: i32) -> (i32, i32) {
    %c0_i32 = arith.constant 0 : i32
    %c0_i32_0 = arith.constant 0 : i32
    %c0_i32_1 = arith.constant 0 : i32
    return %c0_i32, %c0_i32_0 : i32, i32
  }
  func.func @transform_7(%arg0: i32) -> (i32, i32) {
    %c0_i32 = arith.constant 0 : i32
    %c0_i32_0 = arith.constant 0 : i32
    %c0_i32_1 = arith.constant 0 : i32
    return %c0_i32, %c0_i32_0 : i32, i32
  }
  func.func @transform_8(%arg0: i32) -> (i32, i32) {
    %c0_i32 = arith.constant 0 : i32
    %c0_i32_0 = arith.constant 0 : i32
    return %arg0, %c0_i32 : i32, i32
  }
  func.func @transform_9(%arg0: i32) -> (i32, i32) {
    %c0_i32 = arith.constant 0 : i32
    %c0_i32_0 = arith.constant 0 : i32
    return %arg0, %c0_i32 : i32, i32
  }
}

</mosaic_0001>

<llo_original>
// kernel: tpu_custom_call.1
$region0: #{tpu_custom_call.1}
  #allocation0 [shape = 'u32[]', space=smem, size = 0x4, offset = 0x4, fixed_abs, tag = 'smem constant byte address 0x4 - core index']
  #allocation1 [shape = 'u32[144,128]{1,0:T(1,128)}', space=vmem, size = 0x12000, scoped, tag = 'internal scratch']
  %s0 = inlined_call_operand.hbm [shape: f32[128,128], index: 0, kind: input, shape index: {}]
  %s1 = inlined_call_operand.hbm [shape: bf16[128,128], index: 1, kind: input, shape index: {}]
  %s2 = inlined_call_operand.hbm [shape: bf16[128,128], index: 2, kind: input, shape index: {}]
  %s3 = inlined_call_operand.hbm [shape: bf16[128,128], index: 3, kind: input, shape index: {}]
  %s4 = inlined_call_operand.hbm [shape: bf16[128,128], index: 4, kind: input, shape index: {}]
  %s5 = inlined_call_operand.vmem [shape: f32[1,128], index: 5, kind: input, shape index: {}]
  %s6 = inlined_call_operand.hbm [shape: bf16[128,128], index: 6, kind: input, shape index: {}]
  %s7 = inlined_call_operand.vmem [shape: f32[1,128], index: 7, kind: input, shape index: {}]
  %s8 = inlined_call_operand.hbm [shape: f32[128,128], index: 8, kind: output, shape index: {0}]
  %s9 = inlined_call_operand.hbm [shape: bf16[128,128], index: 9, kind: output, shape index: {1}]
  %10 = xla_tuple %s8, %s9
  %s11 = sld [smem:[#allocation0]]
  $region74: #{tpu_custom_call.1} parent=0
    _
  %s13 = ssub.s32 1, %s11
  %s14 = scalar_select 0, %s13, %s11
  $region1: #{tpu_custom_call.1} parent=0
    #allocation2 [shape = 'u8[65536]{0}', space=vmem, size = 0x10000, scoped, tag = 'input window, operand 0, single buffered']
    #allocation3 [shape = 's32[1]{0}', space=sflag, size = 0x4, scoped, tag = 'scoped memory for tpu_custom_call.1']
    #allocation4 [shape = 's32[1]{0}', space=sflag, size = 0x4, scoped, tag = 'scoped memory for tpu_custom_call.1']
    #allocation5 [shape = 'u8[32768]{0}', space=vmem, size = 0x8000, scoped, tag = 'input window, operand 1, single buffered']
    #allocation6 [shape = 's32[1]{0}', space=sflag, size = 0x4, scoped, tag = 'scoped memory for tpu_custom_call.1']
    #allocation7 [shape = 'u8[32768]{0}', space=vmem, size = 0x8000, scoped, tag = 'input window, operand 2, single buffered']
    #allocation8 [shape = 'u8[32768]{0}', space=vmem, size = 0x8000, scoped, tag = 'input window, operand 3, single buffered']
    #allocation9 [shape = 's32[1]{0}', space=sflag, size = 0x4, scoped, tag = 'scoped memory for tpu_custom_call.1']
    #allocation10 [shape = 'u8[32768]{0}', space=vmem, size = 0x8000, scoped, tag = 'input window, operand 4, single buffered']
    #allocation11 [shape = 'u8[32768]{0}', space=vmem, size = 0x8000, scoped, tag = 'input window, operand 6, single buffered']
    #allocation12 [shape = 's32[1]{0}', space=sflag, size = 0x4, scoped, tag = 'scoped memory for tpu_custom_call.1']
    #allocation13 [shape = 'u8[65536]{0}', space=vmem, size = 0x10000, scoped, tag = 'output window, operand 0, single buffered']
    #allocation14 [shape = 'u8[32768]{0}', space=vmem, size = 0x8000, scoped, tag = 'output window, operand 1, single buffered']
    #allocation15 [shape = 's32[1]{0}', space=sflag, size = 0x4, scoped, tag = 'scoped memory for tpu_custom_call.1']
    %15 = vsyncpa [#allocation3], 0
    %16 = vsyncpa [#allocation6], 0
    %17 = vsyncpa [#allocation9], 0
    %18 = vsyncpa [#allocation12], 0
    %19 = vsyncpa [#allocation4], 0
    %20 = vsyncpa [#allocation15], 0
    // Predicated region
    $region2: #{tpu_custom_call.1} parent=1 // pred_check
      _
    $region3: #{tpu_custom_call.1} parent=1 // pred_check_branch
      %22 = sbr.rel (0) target = $region5
    $region4: #{tpu_custom_call.1} parent=1 // pred_region
      %s24 = ssub.s32 2048, 2048
      %25 = vsyncadd [#allocation3], %s24
      %s26 = sshll.u32 [#allocation2], 4
      %s27 = int_to_ptr.vmem [resolvable:$true] %s26
      %32 = dma.hbm_to_vmem [thread:$0]  %s0, 2048, %s27, [#allocation3], 128, 128, 8
    $region5: #{tpu_custom_call.1} parent=1 // pred_fallthru
      _
    // Predicated region
    $region6: #{tpu_custom_call.1} parent=1 // pred_check
      _
    $region7: #{tpu_custom_call.1} parent=1 // pred_check_branch
      %34 = sbr.rel (0) target = $region9
    $region8: #{tpu_custom_call.1} parent=1 // pred_region
      %s36 = ssub.s32 1024, 1024
      %37 = vsyncadd [#allocation6], %s36
      %s38 = sshll.u32 [#allocation5], 4
      %s39 = int_to_ptr.vmem [resolvable:$true] %s38
      %44 = dma.hbm_to_vmem [thread:$0]  %s1, 1024, %s39, [#allocation6], 64, 64, 4
    $region9: #{tpu_custom_call.1} parent=1 // pred_fallthru
      _
    // Predicated region
    $region10: #{tpu_custom_call.1} parent=1 // pred_check
      _
    $region11: #{tpu_custom_call.1} parent=1 // pred_check_branch
      %46 = sbr.rel (0) target = $region13
    $region12: #{tpu_custom_call.1} parent=1 // pred_region
      %s48 = ssub.s32 1024, 1024
      %49 = vsyncadd [#allocation6], %s48
      %s50 = sshll.u32 [#allocation7], 4
      %s51 = int_to_ptr.vmem [resolvable:$true] %s50
      %56 = dma.hbm_to_vmem [thread:$0]  %s2, 1024, %s51, [#allocation6], 64, 64, 4
    $region13: #{tpu_custom_call.1} parent=1 // pred_fallthru
      _
    // Predicated region
    $region14: #{tpu_custom_call.1} parent=1 // pred_check
      _
    $region15: #{tpu_custom_call.1} parent=1 // pred_check_branch
      %58 = sbr.rel (0) target = $region17
    $region16: #{tpu_custom_call.1} parent=1 // pred_region
      %s60 = ssub.s32 1024, 1024
      %61 = vsyncadd [#allocation9], %s60
      %s62 = sshll.u32 [#allocation8], 4
      %s63 = int_to_ptr.vmem [resolvable:$true] %s62
      %68 = dma.hbm_to_vmem [thread:$0]  %s3, 1024, %s63, [#allocation9], 64, 64, 4
    $region17: #{tpu_custom_call.1} parent=1 // pred_fallthru
      _
    // Predicated region
    $region18: #{tpu_custom_call.1} parent=1 // pred_check
      _
    $region19: #{tpu_custom_call.1} parent=1 // pred_check_branch
      %70 = sbr.rel (0) target = $region21
    $region20: #{tpu_custom_call.1} parent=1 // pred_region
      %s72 = ssub.s32 1024, 1024
      %73 = vsyncadd [#allocation9], %s72
      %s74 = sshll.u32 [#allocation10], 4
      %s75 = int_to_ptr.vmem [resolvable:$true] %s74
      %80 = dma.hbm_to_vmem [thread:$0]  %s4, 1024, %s75, [#allocation9], 64, 64, 4
    $region21: #{tpu_custom_call.1} parent=1 // pred_fallthru
      _
    // Predicated region
    $region22: #{tpu_custom_call.1} parent=1 // pred_check
      _
    $region23: #{tpu_custom_call.1} parent=1 // pred_check_branch
      %82 = sbr.rel (0) target = $region25
    $region24: #{tpu_custom_call.1} parent=1 // pred_region
      _
    $region25: #{tpu_custom_call.1} parent=1 // pred_fallthru
      _
    // Predicated region
    $region26: #{tpu_custom_call.1} parent=1 // pred_check
      _
    $region27: #{tpu_custom_call.1} parent=1 // pred_check_branch
      %84 = sbr.rel (0) target = $region29
    $region28: #{tpu_custom_call.1} parent=1 // pred_region
      %s86 = ssub.s32 1024, 1024
      %87 = vsyncadd [#allocation12], %s86
      %s88 = sshll.u32 [#allocation11], 4
      %s89 = int_to_ptr.vmem [resolvable:$true] %s88
      %94 = dma.hbm_to_vmem [thread:$0]  %s6, 1024, %s89, [#allocation12], 64, 64, 4
    $region29: #{tpu_custom_call.1} parent=1 // pred_fallthru
      _
    // Predicated region
    $region30: #{tpu_custom_call.1} parent=1 // pred_check
      _
    $region31: #{tpu_custom_call.1} parent=1 // pred_check_branch
      %96 = sbr.rel (0) target = $region33
    $region32: #{tpu_custom_call.1} parent=1 // pred_region
      _
    $region33: #{tpu_custom_call.1} parent=1 // pred_fallthru
      _
    // Predicated region
    $region34: #{tpu_custom_call.1} parent=1 // pred_check
      _
    $region35: #{tpu_custom_call.1} parent=1 // pred_check_branch
      %98 = sbr.rel (0) target = $region37
    $region36: #{tpu_custom_call.1} parent=1 // pred_region
      %99 = dma.done [#allocation3], 2048
    $region37: #{tpu_custom_call.1} parent=1 // pred_fallthru
      _
    // Predicated region
    $region38: #{tpu_custom_call.1} parent=1 // pred_check
      _
    $region39: #{tpu_custom_call.1} parent=1 // pred_check_branch
      %101 = sbr.rel (0) target = $region41
    $region40: #{tpu_custom_call.1} parent=1 // pred_region
      %102 = dma.done [#allocation6], 1024
    $region41: #{tpu_custom_call.1} parent=1 // pred_fallthru
      _
    // Predicated region
    $region42: #{tpu_custom_call.1} parent=1 // pred_check
      _
    $region43: #{tpu_custom_call.1} parent=1 // pred_check_branch
      %104 = sbr.rel (0) target = $region45
    $region44: #{tpu_custom_call.1} parent=1 // pred_region
      %105 = dma.done [#allocation6], 1024
    $region45: #{tpu_custom_call.1} parent=1 // pred_fallthru
      _
    // Predicated region
    $region46: #{tpu_custom_call.1} parent=1 // pred_check
      _
    $region47: #{tpu_custom_call.1} parent=1 // pred_check_branch
      %107 = sbr.rel (0) target = $region49
    $region48: #{tpu_custom_call.1} parent=1 // pred_region
      %108 = dma.done [#allocation9], 1024
    $region49: #{tpu_custom_call.1} parent=1 // pred_fallthru
      _
    // Predicated region
    $region50: #{tpu_custom_call.1} parent=1 // pred_check
      _
    $region51: #{tpu_custom_call.1} parent=1 // pred_check_branch
      %110 = sbr.rel (0) target = $region53
    $region52: #{tpu_custom_call.1} parent=1 // pred_region
      %111 = dma.done [#allocation9], 1024
    $region53: #{tpu_custom_call.1} parent=1 // pred_fallthru
      _
    // Predicated region
    $region54: #{tpu_custom_call.1} parent=1 // pred_check
      _
    $region55: #{tpu_custom_call.1} parent=1 // pred_check_branch
      %113 = sbr.rel (0) target = $region57
    $region56: #{tpu_custom_call.1} parent=1 // pred_region
      %114 = dma.done [#allocation12], 1024
    $region57: #{tpu_custom_call.1} parent=1 // pred_fallthru
      _
    %v116 = vld [vmem:[#allocation2] sm:$0xff]
    %v117 = vld [vmem:[#allocation2 + $0x8] sm:$0xff]
    %v118 = vld [vmem:[#allocation2 + $0x10] sm:$0xff]
    %v119 = vld [vmem:[#allocation2 + $0x18] sm:$0xff]
    %v120 = vld [vmem:[#allocation2 + $0x20] sm:$0xff]
    %v121 = vld [vmem:[#allocation2 + $0x28] sm:$0xff]
    %v122 = vld [vmem:[#allocation2 + $0x30] sm:$0xff]
    %v123 = vld [vmem:[#allocation2 + $0x38] sm:$0xff]
    %v124 = vld [vmem:[#allocation2 + $0x40] sm:$0xff]
    %v125 = vld [vmem:[#allocation2 + $0x48] sm:$0xff]
    %v126 = vld [vmem:[#allocation2 + $0x50] sm:$0xff]
    %v127 = vld [vmem:[#allocation2 + $0x58] sm:$0xff]
    %v128 = vld [vmem:[#allocation2 + $0x60] sm:$0xff]
    %v129 = vld [vmem:[#allocation2 + $0x68] sm:$0xff]
    %v130 = vld [vmem:[#allocation2 + $0x70] sm:$0xff]
    %v131 = vld [vmem:[#allocation2 + $0x78] sm:$0xff]
    %v132 = vpack.c.bf16 %v117, %v116
    %v133 = vpack.c.bf16 %v119, %v118
    %v134 = vpack.c.bf16 %v121, %v120
    %v135 = vpack.c.bf16 %v123, %v122
    %v136 = vpack.c.bf16 %v125, %v124
    %v137 = vpack.c.bf16 %v127, %v126
    %v138 = vpack.c.bf16 %v129, %v128
    %v139 = vpack.c.bf16 %v131, %v130
    %v140 = vld [vmem:[#allocation8] sm:$0xf]
    %v141 = vld [vmem:[#allocation8 + $0x4] sm:$0xf]
    %v142 = vld [vmem:[#allocation8 + $0x8] sm:$0xf]
    %v143 = vld [vmem:[#allocation8 + $0xc] sm:$0xf]
    %v144 = vld [vmem:[#allocation8 + $0x10] sm:$0xf]
    %v145 = vld [vmem:[#allocation8 + $0x14] sm:$0xf]
    %v146 = vld [vmem:[#allocation8 + $0x18] sm:$0xf]
    %v147 = vld [vmem:[#allocation8 + $0x1c] sm:$0xf]
    %v148 = vld [vmem:[#allocation8 + $0x20] sm:$0xf]
    %v149 = vld [vmem:[#allocation8 + $0x24] sm:$0xf]
    %v150 = vld [vmem:[#allocation8 + $0x28] sm:$0xf]
    %v151 = vld [vmem:[#allocation8 + $0x2c] sm:$0xf]
    %v152 = vld [vmem:[#allocation8 + $0x30] sm:$0xf]
    %v153 = vld [vmem:[#allocation8 + $0x34] sm:$0xf]
    %v154 = vld [vmem:[#allocation8 + $0x38] sm:$0xf]
    %v155 = vld [vmem:[#allocation8 + $0x3c] sm:$0xf]
    %v172 = vunpack.c.l.b16 %v140
    %v173 = vunpack.c.l.b16 %v141
    %v174 = vunpack.c.l.b16 %v142
    %v175 = vunpack.c.l.b16 %v143
    %v176 = vunpack.c.l.b16 %v144
    %v177 = vunpack.c.l.b16 %v145
    %v178 = vunpack.c.l.b16 %v146
    %v179 = vunpack.c.l.b16 %v147
    %v180 = vunpack.c.l.b16 %v148
    %v181 = vunpack.c.l.b16 %v149
    %v182 = vunpack.c.l.b16 %v150
    %v183 = vunpack.c.l.b16 %v151
    %v184 = vunpack.c.l.b16 %v152
    %v185 = vunpack.c.l.b16 %v153
    %v186 = vunpack.c.l.b16 %v154
    %v187 = vunpack.c.l.b16 %v155
    %v188 = vpack.c.b16 %v173, %v172
    %v189 = vpack.c.b16 %v175, %v174
    %v190 = vpack.c.b16 %v177, %v176
    %v191 = vpack.c.b16 %v179, %v178
    %v192 = vpack.c.b16 %v181, %v180
    %v193 = vpack.c.b16 %v183, %v182
    %v194 = vpack.c.b16 %v185, %v184
    %v195 = vpack.c.b16 %v187, %v186
    %204 = vmatprep.subr.bf16.mxu0 0
    %205 = vmatpush1.bf16.msra.mxu0 %v195
    %206 = vmatprep.subr.bf16.mxu0 0
    %207 = vmatpush1.bf16.msra.mxu0 %v194
    %208 = vmatprep.subr.bf16.mxu0 0
    %209 = vmatpush1.bf16.msra.mxu0 %v193
    %210 = vmatprep.subr.bf16.mxu0 0
    %211 = vmatpush1.bf16.msra.mxu0 %v192
    %212 = vmatprep.subr.bf16.mxu0 0
    %213 = vmatpush1.bf16.msra.mxu0 %v191
    %214 = vmatprep.subr.bf16.mxu0 0
    %215 = vmatpush1.bf16.msra.mxu0 %v190
    %216 = vmatprep.subr.bf16.mxu0 0
    %217 = vmatpush1.bf16.msra.mxu0 %v189
    %218 = vmatprep.subr.bf16.mxu0 0
    %219 = vmatpush1.bf16.msra.mxu0 %v188
    %220 = vmatprep.subr.bf16.mxu0 0
    %221 = vmatpush2.bf16.msra.mxu0 0
    %222 = vmatprep.subr.bf16.mxu0 0
    %223 = vmatpush2.bf16.msra.mxu0 0
    %224 = vmatprep.subr.bf16.mxu0 0
    %225 = vmatpush2.bf16.msra.mxu0 0
    %226 = vmatprep.subr.bf16.mxu0 0
    %227 = vmatpush2.bf16.msra.mxu0 0
    %228 = vmatprep.subr.bf16.mxu0 0
    %229 = vmatpush2.bf16.msra.mxu0 0
    %230 = vmatprep.subr.bf16.mxu0 0
    %231 = vmatpush2.bf16.msra.mxu0 0
    %232 = vmatprep.subr.bf16.mxu0 0
    %233 = vmatpush2.bf16.msra.mxu0 0
    %234 = vmatprep.subr.bf16.mxu0 0
    %235 = vmatpush2.bf16.msra.mxu0 0
    %236 = vmatprep.mubr.bf16.mxu0 0
    %237 = vmatmul.mubr.bf16.gmra.mxu0 %v132
    %v238 = vpop.f32.mrf.mxu0
    %v239 = vadd.f32 0.0, %v238
    %v240 = vpop.f32.mrf.mxu0
    %v241 = vpop.f32.mrf.mxu0
    %v242 = vadd.f32 0.0, %v241
    %v243 = vpop.f32.mrf.mxu0
    %244 = vmatprep.mubr.bf16.mxu0 0
    %245 = vmatmul.mubr.bf16.gmra.mxu0 %v133
    %v246 = vpop.f32.mrf.mxu0
    %v247 = vadd.f32 0.0, %v246
    %v248 = vpop.f32.mrf.mxu0
    %v249 = vpop.f32.mrf.mxu0
    %v250 = vadd.f32 0.0, %v249
    %v251 = vpop.f32.mrf.mxu0
    %252 = vmatprep.mubr.bf16.mxu0 0
    %253 = vmatmul.mubr.bf16.gmra.mxu0 %v134
    %v254 = vpop.f32.mrf.mxu0
    %v255 = vadd.f32 0.0, %v254
    %v256 = vpop.f32.mrf.mxu0
    %v257 = vpop.f32.mrf.mxu0
    %v258 = vadd.f32 0.0, %v257
    %v259 = vpop.f32.mrf.mxu0
    %260 = vmatprep.mubr.bf16.mxu0 0
    %261 = vmatmul.mubr.bf16.gmra.mxu0 %v135
    %v262 = vpop.f32.mrf.mxu0
    %v263 = vadd.f32 0.0, %v262
    %v264 = vpop.f32.mrf.mxu0
    %v265 = vpop.f32.mrf.mxu0
    %v266 = vadd.f32 0.0, %v265
    %v267 = vpop.f32.mrf.mxu0
    %268 = vmatprep.mubr.bf16.mxu0 0
    %269 = vmatmul.mubr.bf16.gmra.mxu0 %v136
    %v270 = vpop.f32.mrf.mxu0
    %v271 = vadd.f32 0.0, %v270
    %v272 = vpop.f32.mrf.mxu0
    %v273 = vpop.f32.mrf.mxu0
    %v274 = vadd.f32 0.0, %v273
    %v275 = vpop.f32.mrf.mxu0
    %276 = vmatprep.mubr.bf16.mxu0 0
    %277 = vmatmul.mubr.bf16.gmra.mxu0 %v137
    %v278 = vpop.f32.mrf.mxu0
    %v279 = vadd.f32 0.0, %v278
    %v280 = vpop.f32.mrf.mxu0
    %v281 = vpop.f32.mrf.mxu0
    %v282 = vadd.f32 0.0, %v281
    %v283 = vpop.f32.mrf.mxu0
    %284 = vmatprep.mubr.bf16.mxu0 0
    %285 = vmatmul.mubr.bf16.gmra.mxu0 %v138
    %v286 = vpop.f32.mrf.mxu0
    %v287 = vadd.f32 0.0, %v286
    %v288 = vpop.f32.mrf.mxu0
    %v289 = vpop.f32.mrf.mxu0
    %v290 = vadd.f32 0.0, %v289
    %v291 = vpop.f32.mrf.mxu0
    %292 = vmatprep.mubr.bf16.mxu0 0
    %293 = vmatmul.mubr.bf16.gmra.mxu0 %v139
    %v294 = vpop.f32.mrf.mxu0
    %v295 = vadd.f32 0.0, %v294
    %v296 = vpop.f32.mrf.mxu0
    %v297 = vpop.f32.mrf.mxu0
    %v298 = vadd.f32 0.0, %v297
    %v299 = vpop.f32.mrf.mxu0
    %300 = vdwg.mxu0
    %v301 = vpack.c.bf16 %v242, %v239
    %v302 = vpack.c.bf16 %v250, %v247
    %v303 = vpack.c.bf16 %v258, %v255
    %v304 = vpack.c.bf16 %v266, %v263
    %v305 = vpack.c.bf16 %v274, %v271
    %v306 = vpack.c.bf16 %v282, %v279
    %v307 = vpack.c.bf16 %v290, %v287
    %v308 = vpack.c.bf16 %v298, %v295
    %v309 = vld [vmem:[#allocation5] sm:$0xf]
    %v310 = vld [vmem:[#allocation5 + $0x4] sm:$0xf]
    %v311 = vld [vmem:[#allocation5 + $0x8] sm:$0xf]
    %v312 = vld [vmem:[#allocation5 + $0xc] sm:$0xf]
    %v313 = vld [vmem:[#allocation5 + $0x10] sm:$0xf]
    %v314 = vld [vmem:[#allocation5 + $0x14] sm:$0xf]
    %v315 = vld [vmem:[#allocation5 + $0x18] sm:$0xf]
    %v316 = vld [vmem:[#allocation5 + $0x1c] sm:$0xf]
    %v317 = vld [vmem:[#allocation5 + $0x20] sm:$0xf]
    %v318 = vld [vmem:[#allocation5 + $0x24] sm:$0xf]
    %v319 = vld [vmem:[#allocation5 + $0x28] sm:$0xf]
    %v320 = vld [vmem:[#allocation5 + $0x2c] sm:$0xf]
    %v321 = vld [vmem:[#allocation5 + $0x30] sm:$0xf]
    %v322 = vld [vmem:[#allocation5 + $0x34] sm:$0xf]
    %v323 = vld [vmem:[#allocation5 + $0x38] sm:$0xf]
    %v324 = vld [vmem:[#allocation5 + $0x3c] sm:$0xf]
    %v341 = vunpack.c.l.b16 %v309
    %v342 = vunpack.c.l.b16 %v310
    %v343 = vunpack.c.l.b16 %v311
    %v344 = vunpack.c.l.b16 %v312
    %v345 = vunpack.c.l.b16 %v313
    %v346 = vunpack.c.l.b16 %v314
    %v347 = vunpack.c.l.b16 %v315
    %v348 = vunpack.c.l.b16 %v316
    %v349 = vunpack.c.l.b16 %v317
    %v350 = vunpack.c.l.b16 %v318
    %v351 = vunpack.c.l.b16 %v319
    %v352 = vunpack.c.l.b16 %v320
    %v353 = vunpack.c.l.b16 %v321
    %v354 = vunpack.c.l.b16 %v322
    %v355 = vunpack.c.l.b16 %v323
    %v356 = vunpack.c.l.b16 %v324
    %v357 = vpack.c.b16 %v342, %v341
    %v358 = vpack.c.b16 %v344, %v343
    %v359 = vpack.c.b16 %v346, %v345
    %v360 = vpack.c.b16 %v348, %v347
    %v361 = vpack.c.b16 %v350, %v349
    %v362 = vpack.c.b16 %v352, %v351
    %v363 = vpack.c.b16 %v354, %v353
    %v364 = vpack.c.b16 %v356, %v355
    %373 = vmatprep.subr.bf16.mxu0 0
    %374 = vmatpush1.bf16.xpose.msra.mxu0 %v364
    %375 = vmatprep.subr.bf16.mxu0 0
    %376 = vmatpush1.bf16.xpose.msra.mxu0 %v363
    %377 = vmatprep.subr.bf16.mxu0 0
    %378 = vmatpush1.bf16.xpose.msra.mxu0 %v362
    %379 = vmatprep.subr.bf16.mxu0 0
    %380 = vmatpush1.bf16.xpose.msra.mxu0 %v361
    %381 = vmatprep.subr.bf16.mxu0 0
    %382 = vmatpush1.bf16.xpose.msra.mxu0 %v360
    %383 = vmatprep.subr.bf16.mxu0 0
    %384 = vmatpush1.bf16.xpose.msra.mxu0 %v359
    %385 = vmatprep.subr.bf16.mxu0 0
    %386 = vmatpush1.bf16.xpose.msra.mxu0 %v358
    %387 = vmatprep.subr.bf16.mxu0 0
    %388 = vmatpush1.bf16.xpose.msra.mxu0 %v357
    %389 = vmatprep.subr.bf16.mxu0 0
    %390 = vmatpush2.bf16.xpose.msra.mxu0 0
    %391 = vmatprep.subr.bf16.mxu0 0
    %392 = vmatpush2.bf16.xpose.msra.mxu0 0
    %393 = vmatprep.subr.bf16.mxu0 0
    %394 = vmatpush2.bf16.xpose.msra.mxu0 0
    %395 = vmatprep.subr.bf16.mxu0 0
    %396 = vmatpush2.bf16.xpose.msra.mxu0 0
    %397 = vmatprep.subr.bf16.mxu0 0
    %398 = vmatpush2.bf16.xpose.msra.mxu0 0
    %399 = vmatprep.subr.bf16.mxu0 0
    %400 = vmatpush2.bf16.xpose.msra.mxu0 0
    %401 = vmatprep.subr.bf16.mxu0 0
    %402 = vmatpush2.bf16.xpose.msra.mxu0 0
    %403 = vmatprep.subr.bf16.mxu0 0
    %404 = vmatpush2.bf16.xpose.msra.mxu0 0
    %405 = vmatprep.mubr.bf16.mxu0 0
    %406 = vmatmul.mubr.bf16.gmra.mxu0 %v301
    %v407 = vpop.f32.mrf.mxu0
    %v408 = vadd.f32 0.0, %v407
    %v409 = vpop.f32.mrf.mxu0
    %v410 = vpop.f32.mrf.mxu0
    %v411 = vadd.f32 0.0, %v410
    %v412 = vpop.f32.mrf.mxu0
    %413 = vmatprep.mubr.bf16.mxu0 0
    %414 = vmatmul.mubr.bf16.gmra.mxu0 %v302
    %v415 = vpop.f32.mrf.mxu0
    %v416 = vadd.f32 0.0, %v415
    %v417 = vpop.f32.mrf.mxu0
    %v418 = vpop.f32.mrf.mxu0
    %v419 = vadd.f32 0.0, %v418
    %v420 = vpop.f32.mrf.mxu0
    %421 = vmatprep.mubr.bf16.mxu0 0
    %422 = vmatmul.mubr.bf16.gmra.mxu0 %v303
    %v423 = vpop.f32.mrf.mxu0
    %v424 = vadd.f32 0.0, %v423
    %v425 = vpop.f32.mrf.mxu0
    %v426 = vpop.f32.mrf.mxu0
    %v427 = vadd.f32 0.0, %v426
    %v428 = vpop.f32.mrf.mxu0
    %429 = vmatprep.mubr.bf16.mxu0 0
    %430 = vmatmul.mubr.bf16.gmra.mxu0 %v304
    %v431 = vpop.f32.mrf.mxu0
    %v432 = vadd.f32 0.0, %v431
    %v433 = vpop.f32.mrf.mxu0
    %v434 = vpop.f32.mrf.mxu0
    %v435 = vadd.f32 0.0, %v434
    %v436 = vpop.f32.mrf.mxu0
    %437 = vmatprep.mubr.bf16.mxu0 0
    %438 = vmatmul.mubr.bf16.gmra.mxu0 %v305
    %v439 = vpop.f32.mrf.mxu0
    %v440 = vadd.f32 0.0, %v439
    %v441 = vpop.f32.mrf.mxu0
    %v442 = vpop.f32.mrf.mxu0
    %v443 = vadd.f32 0.0, %v442
    %v444 = vpop.f32.mrf.mxu0
    %445 = vmatprep.mubr.bf16.mxu0 0
    %446 = vmatmul.mubr.bf16.gmra.mxu0 %v306
    %v447 = vpop.f32.mrf.mxu0
    %v448 = vadd.f32 0.0, %v447
    %v449 = vpop.f32.mrf.mxu0
    %v450 = vpop.f32.mrf.mxu0
    %v451 = vadd.f32 0.0, %v450
    %v452 = vpop.f32.mrf.mxu0
    %453 = vmatprep.mubr.bf16.mxu0 0
    %454 = vmatmul.mubr.bf16.gmra.mxu0 %v307
    %v455 = vpop.f32.mrf.mxu0
    %v456 = vadd.f32 0.0, %v455
    %v457 = vpop.f32.mrf.mxu0
    %v458 = vpop.f32.mrf.mxu0
    %v459 = vadd.f32 0.0, %v458
    %v460 = vpop.f32.mrf.mxu0
    %461 = vmatprep.mubr.bf16.mxu0 0
    %462 = vmatmul.mubr.bf16.gmra.mxu0 %v308
    %v463 = vpop.f32.mrf.mxu0
    %v464 = vadd.f32 0.0, %v463
    %v465 = vpop.f32.mrf.mxu0
    %v466 = vpop.f32.mrf.mxu0
    %v467 = vadd.f32 0.0, %v466
    %v468 = vpop.f32.mrf.mxu0
    %469 = vdwg.mxu0
    %v470 = vlaneseq
    %v471 = vand.u32 %v470, 127
    %vm472 = vcmp.lt.s32.totalorder %v471, 8
    %v473 = vsel %vm472, %v408, -1e+30
    %v474 = vsel %vm472, %v411, -1e+30
    %v475 = vsel %vm472, %v416, -1e+30
    %v476 = vsel %vm472, %v419, -1e+30
    %v477 = vsel %vm472, %v424, -1e+30
    %v478 = vsel %vm472, %v427, -1e+30
    %v479 = vsel %vm472, %v432, -1e+30
    %v480 = vsel %vm472, %v435, -1e+30
    %v481 = vsel %vm472, %v440, -1e+30
    %v482 = vsel %vm472, %v443, -1e+30
    %v483 = vsel %vm472, %v448, -1e+30
    %v484 = vsel %vm472, %v451, -1e+30
    %v485 = vsel %vm472, %v456, -1e+30
    %v486 = vsel %vm472, %v459, -1e+30
    %v487 = vsel %vm472, %v464, -1e+30
    %v488 = vsel %vm472, %v467, -1e+30
    %489 = vmax.xlane.f32.xlu0 %v473
    %v490 = vpop.xlane.xlu0 %489
    %491 = vmax.xlane.f32.xlu0 %v474
    %v492 = vpop.xlane.xlu0 %491
    %493 = vmax.xlane.f32.xlu0 %v475
    %v494 = vpop.xlane.xlu0 %493
    %495 = vmax.xlane.f32.xlu0 %v476
    %v496 = vpop.xlane.xlu0 %495
    %497 = vmax.xlane.f32.xlu0 %v477
    %v498 = vpop.xlane.xlu0 %497
    %499 = vmax.xlane.f32.xlu0 %v478
    %v500 = vpop.xlane.xlu0 %499
    %501 = vmax.xlane.f32.xlu0 %v479
    %v502 = vpop.xlane.xlu0 %501
    %503 = vmax.xlane.f32.xlu0 %v480
    %v504 = vpop.xlane.xlu0 %503
    %505 = vmax.xlane.f32.xlu0 %v481
    %v506 = vpop.xlane.xlu0 %505
    %507 = vmax.xlane.f32.xlu0 %v482
    %v508 = vpop.xlane.xlu0 %507
    %509 = vmax.xlane.f32.xlu0 %v483
    %v510 = vpop.xlane.xlu0 %509
    %511 = vmax.xlane.f32.xlu0 %v484
    %v512 = vpop.xlane.xlu0 %511
    %513 = vmax.xlane.f32.xlu0 %v485
    %v514 = vpop.xlane.xlu0 %513
    %515 = vmax.xlane.f32.xlu0 %v486
    %v516 = vpop.xlane.xlu0 %515
    %517 = vmax.xlane.f32.xlu0 %v487
    %v518 = vpop.xlane.xlu0 %517
    %519 = vmax.xlane.f32.xlu0 %v488
    %v520 = vpop.xlane.xlu0 %519
    %v521 = vsub.f32 %v473, %v490
    %v522 = vsub.f32 %v474, %v492
    %v523 = vsub.f32 %v475, %v494
    %v524 = vsub.f32 %v476, %v496
    %v525 = vsub.f32 %v477, %v498
    %v526 = vsub.f32 %v478, %v500
    %v527 = vsub.f32 %v479, %v502
    %v528 = vsub.f32 %v480, %v504
    %v529 = vsub.f32 %v481, %v506
    %v530 = vsub.f32 %v482, %v508
    %v531 = vsub.f32 %v483, %v510
    %v532 = vsub.f32 %v484, %v512
    %v533 = vsub.f32 %v485, %v514
    %v534 = vsub.f32 %v486, %v516
    %v535 = vsub.f32 %v487, %v518
    %v536 = vsub.f32 %v488, %v520
    %v537 = vmul.f32 %v521, 1.442695
    %v538 = vpow.pop %v537
    %v539 = vmul.f32 %v522, 1.442695
    %v540 = vpow.pop %v539
    %v541 = vmul.f32 %v523, 1.442695
    %v542 = vpow.pop %v541
    %v543 = vmul.f32 %v524, 1.442695
    %v544 = vpow.pop %v543
    %v545 = vmul.f32 %v525, 1.442695
    %v546 = vpow.pop %v545
    %v547 = vmul.f32 %v526, 1.442695
    %v548 = vpow.pop %v547
    %v549 = vmul.f32 %v527, 1.442695
    %v550 = vpow.pop %v549
    %v551 = vmul.f32 %v528, 1.442695
    %v552 = vpow.pop %v551
    %v553 = vmul.f32 %v529, 1.442695
    %v554 = vpow.pop %v553
    %v555 = vmul.f32 %v530, 1.442695
    %v556 = vpow.pop %v555
    %v557 = vmul.f32 %v531, 1.442695
    %v558 = vpow.pop %v557
    %v559 = vmul.f32 %v532, 1.442695
    %v560 = vpow.pop %v559
    %v561 = vmul.f32 %v533, 1.442695
    %v562 = vpow.pop %v561
    %v563 = vmul.f32 %v534, 1.442695
    %v564 = vpow.pop %v563
    %v565 = vmul.f32 %v535, 1.442695
    %v566 = vpow.pop %v565
    %v567 = vmul.f32 %v536, 1.442695
    %v568 = vpow.pop %v567
    %569 = vadd.xlane.f32.xlu0 %v538
    %v570 = vpop.xlane.xlu0 %569
    %571 = vadd.xlane.f32.xlu0 %v540
    %v572 = vpop.xlane.xlu0 %571
    %573 = vadd.xlane.f32.xlu0 %v542
    %v574 = vpop.xlane.xlu0 %573
    %575 = vadd.xlane.f32.xlu0 %v544
    %v576 = vpop.xlane.xlu0 %575
    %577 = vadd.xlane.f32.xlu0 %v546
    %v578 = vpop.xlane.xlu0 %577
    %579 = vadd.xlane.f32.xlu0 %v548
    %v580 = vpop.xlane.xlu0 %579
    %581 = vadd.xlane.f32.xlu0 %v550
    %v582 = vpop.xlane.xlu0 %581
    %583 = vadd.xlane.f32.xlu0 %v552
    %v584 = vpop.xlane.xlu0 %583
    %585 = vadd.xlane.f32.xlu0 %v554
    %v586 = vpop.xlane.xlu0 %585
    %587 = vadd.xlane.f32.xlu0 %v556
    %v588 = vpop.xlane.xlu0 %587
    %589 = vadd.xlane.f32.xlu0 %v558
    %v590 = vpop.xlane.xlu0 %589
    %591 = vadd.xlane.f32.xlu0 %v560
    %v592 = vpop.xlane.xlu0 %591
    %593 = vadd.xlane.f32.xlu0 %v562
    %v594 = vpop.xlane.xlu0 %593
    %595 = vadd.xlane.f32.xlu0 %v564
    %v596 = vpop.xlane.xlu0 %595
    %597 = vadd.xlane.f32.xlu0 %v566
    %v598 = vpop.xlane.xlu0 %597
    %599 = vadd.xlane.f32.xlu0 %v568
    %v600 = vpop.xlane.xlu0 %599
    %v601 = vrcp.pop %v570
    %v602 = vrcp.pop %v572
    %v603 = vrcp.pop %v574
    %v604 = vrcp.pop %v576
    %v605 = vrcp.pop %v578
    %v606 = vrcp.pop %v580
    %v607 = vrcp.pop %v582
    %v608 = vrcp.pop %v584
    %v609 = vrcp.pop %v586
    %v610 = vrcp.pop %v588
    %v611 = vrcp.pop %v590
    %v612 = vrcp.pop %v592
    %v613 = vrcp.pop %v594
    %v614 = vrcp.pop %v596
    %v615 = vrcp.pop %v598
    %v616 = vrcp.pop %v600
    %v617 = vmul.f32 %v538, %v601
    %v618 = vmul.f32 %v540, %v602
    %v619 = vmul.f32 %v542, %v603
    %v620 = vmul.f32 %v544, %v604
    %v621 = vmul.f32 %v546, %v605
    %v622 = vmul.f32 %v548, %v606
    %v623 = vmul.f32 %v550, %v607
    %v624 = vmul.f32 %v552, %v608
    %v625 = vmul.f32 %v554, %v609
    %v626 = vmul.f32 %v556, %v610
    %v627 = vmul.f32 %v558, %v611
    %v628 = vmul.f32 %v560, %v612
    %v629 = vmul.f32 %v562, %v613
    %v630 = vmul.f32 %v564, %v614
    %v631 = vmul.f32 %v566, %v615
    %v632 = vmul.f32 %v568, %v616
    %v633 = vpack.c.bf16 %v618, %v617
    %v634 = vpack.c.bf16 %v620, %v619
    %v635 = vpack.c.bf16 %v622, %v621
    %v636 = vpack.c.bf16 %v624, %v623
    %v637 = vpack.c.bf16 %v626, %v625
    %v638 = vpack.c.bf16 %v628, %v627
    %v639 = vpack.c.bf16 %v630, %v629
    %v640 = vpack.c.bf16 %v632, %v631
    %v649 = vunpack.c.l.b16 %v633
    %v650 = vunpack.c.h.b16 %v633
    %v651 = vunpack.c.l.b16 %v634
    %v652 = vunpack.c.h.b16 %v634
    %v653 = vunpack.c.l.b16 %v635
    %v654 = vunpack.c.h.b16 %v635
    %v655 = vunpack.c.l.b16 %v636
    %v656 = vunpack.c.h.b16 %v636
    %v657 = vunpack.c.l.b16 %v637
    %v658 = vunpack.c.h.b16 %v637
    %v659 = vunpack.c.l.b16 %v638
    %v660 = vunpack.c.h.b16 %v638
    %v661 = vunpack.c.l.b16 %v639
    %v662 = vunpack.c.h.b16 %v639
    %v663 = vunpack.c.l.b16 %v640
    %v664 = vunpack.c.h.b16 %v640
    %v665 = vpack.c.b16 %v649, %v649
    %v666 = vpack.c.b16 %v650, %v650
    %v667 = vpack.c.b16 %v651, %v651
    %v668 = vpack.c.b16 %v652, %v652
    %v669 = vpack.c.b16 %v653, %v653
    %v670 = vpack.c.b16 %v654, %v654
    %v671 = vpack.c.b16 %v655, %v655
    %v672 = vpack.c.b16 %v656, %v656
    %v673 = vpack.c.b16 %v657, %v657
    %v674 = vpack.c.b16 %v658, %v658
    %v675 = vpack.c.b16 %v659, %v659
    %v676 = vpack.c.b16 %v660, %v660
    %v677 = vpack.c.b16 %v661, %v661
    %v678 = vpack.c.b16 %v662, %v662
    %v679 = vpack.c.b16 %v663, %v663
    %v680 = vpack.c.b16 %v664, %v664
    %697 = vst [vmem:[#allocation14] sm:$0xf] %v665
    %698 = vst [vmem:[#allocation14 + $0x4] sm:$0xf] %v666
    %699 = vst [vmem:[#allocation14 + $0x8] sm:$0xf] %v667
    %700 = vst [vmem:[#allocation14 + $0xc] sm:$0xf] %v668
    %701 = vst [vmem:[#allocation14 + $0x10] sm:$0xf] %v669
    %702 = vst [vmem:[#allocation14 + $0x14] sm:$0xf] %v670
    %703 = vst [vmem:[#allocation14 + $0x18] sm:$0xf] %v671
    %704 = vst [vmem:[#allocation14 + $0x1c] sm:$0xf] %v672
    %705 = vst [vmem:[#allocation14 + $0x20] sm:$0xf] %v673
    %706 = vst [vmem:[#allocation14 + $0x24] sm:$0xf] %v674
    %707 = vst [vmem:[#allocation14 + $0x28] sm:$0xf] %v675
    %708 = vst [vmem:[#allocation14 + $0x2c] sm:$0xf] %v676
    %709 = vst [vmem:[#allocation14 + $0x30] sm:$0xf] %v677
    %710 = vst [vmem:[#allocation14 + $0x34] sm:$0xf] %v678
    %711 = vst [vmem:[#allocation14 + $0x38] sm:$0xf] %v679
    %712 = vst [vmem:[#allocation14 + $0x3c] sm:$0xf] %v680
    %v713 = vld [vmem:[#allocation7] sm:$0xf]
    %v714 = vld [vmem:[#allocation7 + $0x4] sm:$0xf]
    %v715 = vld [vmem:[#allocation7 + $0x8] sm:$0xf]
    %v716 = vld [vmem:[#allocation7 + $0xc] sm:$0xf]
    %v717 = vld [vmem:[#allocation7 + $0x10] sm:$0xf]
    %v718 = vld [vmem:[#allocation7 + $0x14] sm:$0xf]
    %v719 = vld [vmem:[#allocation7 + $0x18] sm:$0xf]
    %v720 = vld [vmem:[#allocation7 + $0x1c] sm:$0xf]
    %v721 = vld [vmem:[#allocation7 + $0x20] sm:$0xf]
    %v722 = vld [vmem:[#allocation7 + $0x24] sm:$0xf]
    %v723 = vld [vmem:[#allocation7 + $0x28] sm:$0xf]
    %v724 = vld [vmem:[#allocation7 + $0x2c] sm:$0xf]
    %v725 = vld [vmem:[#allocation7 + $0x30] sm:$0xf]
    %v726 = vld [vmem:[#allocation7 + $0x34] sm:$0xf]
    %v727 = vld [vmem:[#allocation7 + $0x38] sm:$0xf]
    %v728 = vld [vmem:[#allocation7 + $0x3c] sm:$0xf]
    %v745 = vunpack.c.l.b16 %v713
    %v746 = vunpack.c.l.b16 %v714
    %v747 = vunpack.c.l.b16 %v715
    %v748 = vunpack.c.l.b16 %v716
    %v749 = vunpack.c.l.b16 %v717
    %v750 = vunpack.c.l.b16 %v718
    %v751 = vunpack.c.l.b16 %v719
    %v752 = vunpack.c.l.b16 %v720
    %v753 = vunpack.c.l.b16 %v721
    %v754 = vunpack.c.l.b16 %v722
    %v755 = vunpack.c.l.b16 %v723
    %v756 = vunpack.c.l.b16 %v724
    %v757 = vunpack.c.l.b16 %v725
    %v758 = vunpack.c.l.b16 %v726
    %v759 = vunpack.c.l.b16 %v727
    %v760 = vunpack.c.l.b16 %v728
    %v761 = vpack.c.b16 %v746, %v745
    %v762 = vpack.c.b16 %v748, %v747
    %v763 = vpack.c.b16 %v750, %v749
    %v764 = vpack.c.b16 %v752, %v751
    %v765 = vpack.c.b16 %v754, %v753
    %v766 = vpack.c.b16 %v756, %v755
    %v767 = vpack.c.b16 %v758, %v757
    %v768 = vpack.c.b16 %v760, %v759
    %777 = vmatprep.subr.bf16.mxu0 0
    %778 = vmatpush1.bf16.msra.mxu0 %v768
    %779 = vmatprep.subr.bf16.mxu0 0
    %780 = vmatpush1.bf16.msra.mxu0 %v767
    %781 = vmatprep.subr.bf16.mxu0 0
    %782 = vmatpush1.bf16.msra.mxu0 %v766
    %783 = vmatprep.subr.bf16.mxu0 0
    %784 = vmatpush1.bf16.msra.mxu0 %v765
    %785 = vmatprep.subr.bf16.mxu0 0
    %786 = vmatpush1.bf16.msra.mxu0 %v764
    %787 = vmatprep.subr.bf16.mxu0 0
    %788 = vmatpush1.bf16.msra.mxu0 %v763
    %789 = vmatprep.subr.bf16.mxu0 0
    %790 = vmatpush1.bf16.msra.mxu0 %v762
    %791 = vmatprep.subr.bf16.mxu0 0
    %792 = vmatpush1.bf16.msra.mxu0 %v761
    %793 = vmatprep.subr.bf16.mxu0 0
    %794 = vmatpush2.bf16.msra.mxu0 0
    %795 = vmatprep.subr.bf16.mxu0 0
    %796 = vmatpush2.bf16.msra.mxu0 0
    %797 = vmatprep.subr.bf16.mxu0 0
    %798 = vmatpush2.bf16.msra.mxu0 0
    %799 = vmatprep.subr.bf16.mxu0 0
    %800 = vmatpush2.bf16.msra.mxu0 0
    %801 = vmatprep.subr.bf16.mxu0 0
    %802 = vmatpush2.bf16.msra.mxu0 0
    %803 = vmatprep.subr.bf16.mxu0 0
    %804 = vmatpush2.bf16.msra.mxu0 0
    %805 = vmatprep.subr.bf16.mxu0 0
    %806 = vmatpush2.bf16.msra.mxu0 0
    %807 = vmatprep.subr.bf16.mxu0 0
    %808 = vmatpush2.bf16.msra.mxu0 0
    %809 = vmatprep.mubr.bf16.mxu0 0
    %810 = vmatmul.mubr.bf16.gmra.mxu0 %v633
    %v811 = vpop.f32.mrf.mxu0
    %v812 = vadd.f32 %v116, %v811
    %v813 = vpop.f32.mrf.mxu0
    %v814 = vpop.f32.mrf.mxu0
    %v815 = vadd.f32 %v117, %v814
    %v816 = vpop.f32.mrf.mxu0
    %817 = vmatprep.mubr.bf16.mxu0 0
    %818 = vmatmul.mubr.bf16.gmra.mxu0 %v634
    %v819 = vpop.f32.mrf.mxu0
    %v820 = vadd.f32 %v118, %v819
    %v821 = vpop.f32.mrf.mxu0
    %v822 = vpop.f32.mrf.mxu0
    %v823 = vadd.f32 %v119, %v822
    %v824 = vpop.f32.mrf.mxu0
    %825 = vmatprep.mubr.bf16.mxu0 0
    %826 = vmatmul.mubr.bf16.gmra.mxu0 %v635
    %v827 = vpop.f32.mrf.mxu0
    %v828 = vadd.f32 %v120, %v827
    %v829 = vpop.f32.mrf.mxu0
    %v830 = vpop.f32.mrf.mxu0
    %v831 = vadd.f32 %v121, %v830
    %v832 = vpop.f32.mrf.mxu0
    %833 = vmatprep.mubr.bf16.mxu0 0
    %834 = vmatmul.mubr.bf16.gmra.mxu0 %v636
    %v835 = vpop.f32.mrf.mxu0
    %v836 = vadd.f32 %v122, %v835
    %v837 = vpop.f32.mrf.mxu0
    %v838 = vpop.f32.mrf.mxu0
    %v839 = vadd.f32 %v123, %v838
    %v840 = vpop.f32.mrf.mxu0
    %841 = vmatprep.mubr.bf16.mxu0 0
    %842 = vmatmul.mubr.bf16.gmra.mxu0 %v637
    %v843 = vpop.f32.mrf.mxu0
    %v844 = vadd.f32 %v124, %v843
    %v845 = vpop.f32.mrf.mxu0
    %v846 = vpop.f32.mrf.mxu0
    %v847 = vadd.f32 %v125, %v846
    %v848 = vpop.f32.mrf.mxu0
    %849 = vmatprep.mubr.bf16.mxu0 0
    %850 = vmatmul.mubr.bf16.gmra.mxu0 %v638
    %v851 = vpop.f32.mrf.mxu0
    %v852 = vadd.f32 %v126, %v851
    %v853 = vpop.f32.mrf.mxu0
    %v854 = vpop.f32.mrf.mxu0
    %v855 = vadd.f32 %v127, %v854
    %v856 = vpop.f32.mrf.mxu0
    %857 = vmatprep.mubr.bf16.mxu0 0
    %858 = vmatmul.mubr.bf16.gmra.mxu0 %v639
    %v859 = vpop.f32.mrf.mxu0
    %v860 = vadd.f32 %v128, %v859
    %v861 = vpop.f32.mrf.mxu0
    %v862 = vpop.f32.mrf.mxu0
    %v863 = vadd.f32 %v129, %v862
    %v864 = vpop.f32.mrf.mxu0
    %865 = vmatprep.mubr.bf16.mxu0 0
    %866 = vmatmul.mubr.bf16.gmra.mxu0 %v640
    %v867 = vpop.f32.mrf.mxu0
    %v868 = vadd.f32 %v130, %v867
    %v869 = vpop.f32.mrf.mxu0
    %v870 = vpop.f32.mrf.mxu0
    %v871 = vadd.f32 %v131, %v870
    %v872 = vpop.f32.mrf.mxu0
    %873 = vdwg.mxu0
    %v874 = vpack.c.bf16 %v815, %v812
    %v875 = vpack.c.bf16 %v823, %v820
    %v876 = vpack.c.bf16 %v831, %v828
    %v877 = vpack.c.bf16 %v839, %v836
    %v878 = vpack.c.bf16 %v847, %v844
    %v879 = vpack.c.bf16 %v855, %v852
    %v880 = vpack.c.bf16 %v863, %v860
    %v881 = vpack.c.bf16 %v871, %v868
    %v882 = vld [vmem:[#allocation10] sm:$0xf]
    %v883 = vld [vmem:[#allocation10 + $0x4] sm:$0xf]
    %v884 = vld [vmem:[#allocation10 + $0x8] sm:$0xf]
    %v885 = vld [vmem:[#allocation10 + $0xc] sm:$0xf]
    %v886 = vld [vmem:[#allocation10 + $0x10] sm:$0xf]
    %v887 = vld [vmem:[#allocation10 + $0x14] sm:$0xf]
    %v888 = vld [vmem:[#allocation10 + $0x18] sm:$0xf]
    %v889 = vld [vmem:[#allocation10 + $0x1c] sm:$0xf]
    %v890 = vld [vmem:[#allocation10 + $0x20] sm:$0xf]
    %v891 = vld [vmem:[#allocation10 + $0x24] sm:$0xf]
    %v892 = vld [vmem:[#allocation10 + $0x28] sm:$0xf]
    %v893 = vld [vmem:[#allocation10 + $0x2c] sm:$0xf]
    %v894 = vld [vmem:[#allocation10 + $0x30] sm:$0xf]
    %v895 = vld [vmem:[#allocation10 + $0x34] sm:$0xf]
    %v896 = vld [vmem:[#allocation10 + $0x38] sm:$0xf]
    %v897 = vld [vmem:[#allocation10 + $0x3c] sm:$0xf]
    %v898 = vld [vmem:[%s5] sm:$0x1]
    %v900 = vlaneseq
    %v901 = vshrl.u32 %v900, 7
    %v902 = vsub.s32 0, %v901
    %v903 = vrot.slane %v898, %v902
    %v921 = vunpack.c.l.b16 %v882
    %v922 = vunpack.c.l.b16 %v883
    %v923 = vunpack.c.l.b16 %v884
    %v924 = vunpack.c.l.b16 %v885
    %v925 = vunpack.c.l.b16 %v886
    %v926 = vunpack.c.l.b16 %v887
    %v927 = vunpack.c.l.b16 %v888
    %v928 = vunpack.c.l.b16 %v889
    %v929 = vunpack.c.l.b16 %v890
    %v930 = vunpack.c.l.b16 %v891
    %v931 = vunpack.c.l.b16 %v892
    %v932 = vunpack.c.l.b16 %v893
    %v933 = vunpack.c.l.b16 %v894
    %v934 = vunpack.c.l.b16 %v895
    %v935 = vunpack.c.l.b16 %v896
    %v936 = vunpack.c.l.b16 %v897
    %v937 = vpack.c.b16 %v922, %v921
    %v938 = vpack.c.b16 %v924, %v923
    %v939 = vpack.c.b16 %v926, %v925
    %v940 = vpack.c.b16 %v928, %v927
    %v941 = vpack.c.b16 %v930, %v929
    %v942 = vpack.c.b16 %v932, %v931
    %v943 = vpack.c.b16 %v934, %v933
    %v944 = vpack.c.b16 %v936, %v935
    %953 = vmatprep.subr.bf16.mxu0 0
    %954 = vmatpush1.bf16.msra.mxu0 %v944
    %955 = vmatprep.subr.bf16.mxu0 0
    %956 = vmatpush1.bf16.msra.mxu0 %v943
    %957 = vmatprep.subr.bf16.mxu0 0
    %958 = vmatpush1.bf16.msra.mxu0 %v942
    %959 = vmatprep.subr.bf16.mxu0 0
    %960 = vmatpush1.bf16.msra.mxu0 %v941
    %961 = vmatprep.subr.bf16.mxu0 0
    %962 = vmatpush1.bf16.msra.mxu0 %v940
    %963 = vmatprep.subr.bf16.mxu0 0
    %964 = vmatpush1.bf16.msra.mxu0 %v939
    %965 = vmatprep.subr.bf16.mxu0 0
    %966 = vmatpush1.bf16.msra.mxu0 %v938
    %967 = vmatprep.subr.bf16.mxu0 0
    %968 = vmatpush1.bf16.msra.mxu0 %v937
    %969 = vmatprep.subr.bf16.mxu0 0
    %970 = vmatpush2.bf16.msra.mxu0 0
    %971 = vmatprep.subr.bf16.mxu0 0
    %972 = vmatpush2.bf16.msra.mxu0 0
    %973 = vmatprep.subr.bf16.mxu0 0
    %974 = vmatpush2.bf16.msra.mxu0 0
    %975 = vmatprep.subr.bf16.mxu0 0
    %976 = vmatpush2.bf16.msra.mxu0 0
    %977 = vmatprep.subr.bf16.mxu0 0
    %978 = vmatpush2.bf16.msra.mxu0 0
    %979 = vmatprep.subr.bf16.mxu0 0
    %980 = vmatpush2.bf16.msra.mxu0 0
    %981 = vmatprep.subr.bf16.mxu0 0
    %982 = vmatpush2.bf16.msra.mxu0 0
    %983 = vmatprep.subr.bf16.mxu0 0
    %984 = vmatpush2.bf16.msra.mxu0 0
    %985 = vmatprep.mubr.bf16.mxu0 0
    %986 = vmatmul.mubr.bf16.gmra.mxu0 %v874
    %v987 = vpop.f32.mrf.mxu0
    %v988 = vadd.f32 %v903, %v987
    %v989 = vpop.f32.mrf.mxu0
    %v990 = vpop.f32.mrf.mxu0
    %v991 = vadd.f32 %v903, %v990
    %v992 = vpop.f32.mrf.mxu0
    %993 = vmatprep.mubr.bf16.mxu0 0
    %994 = vmatmul.mubr.bf16.gmra.mxu0 %v875
    %v995 = vpop.f32.mrf.mxu0
    %v996 = vadd.f32 %v903, %v995
    %v997 = vpop.f32.mrf.mxu0
    %v998 = vpop.f32.mrf.mxu0
    %v999 = vadd.f32 %v903, %v998
    %v1000 = vpop.f32.mrf.mxu0
    %1001 = vmatprep.mubr.bf16.mxu0 0
    %1002 = vmatmul.mubr.bf16.gmra.mxu0 %v876
    %v1003 = vpop.f32.mrf.mxu0
    %v1004 = vadd.f32 %v903, %v1003
    %v1005 = vpop.f32.mrf.mxu0
    %v1006 = vpop.f32.mrf.mxu0
    %v1007 = vadd.f32 %v903, %v1006
    %v1008 = vpop.f32.mrf.mxu0
    %1009 = vmatprep.mubr.bf16.mxu0 0
    %1010 = vmatmul.mubr.bf16.gmra.mxu0 %v877
    %v1011 = vpop.f32.mrf.mxu0
    %v1012 = vadd.f32 %v903, %v1011
    %v1013 = vpop.f32.mrf.mxu0
    %v1014 = vpop.f32.mrf.mxu0
    %v1015 = vadd.f32 %v903, %v1014
    %v1016 = vpop.f32.mrf.mxu0
    %1017 = vmatprep.mubr.bf16.mxu0 0
    %1018 = vmatmul.mubr.bf16.gmra.mxu0 %v878
    %v1019 = vpop.f32.mrf.mxu0
    %v1020 = vadd.f32 %v903, %v1019
    %v1021 = vpop.f32.mrf.mxu0
    %v1022 = vpop.f32.mrf.mxu0
    %v1023 = vadd.f32 %v903, %v1022
    %v1024 = vpop.f32.mrf.mxu0
    %1025 = vmatprep.mubr.bf16.mxu0 0
    %1026 = vmatmul.mubr.bf16.gmra.mxu0 %v879
    %v1027 = vpop.f32.mrf.mxu0
    %v1028 = vadd.f32 %v903, %v1027
    %v1029 = vpop.f32.mrf.mxu0
    %v1030 = vpop.f32.mrf.mxu0
    %v1031 = vadd.f32 %v903, %v1030
    %v1032 = vpop.f32.mrf.mxu0
    %1033 = vmatprep.mubr.bf16.mxu0 0
    %1034 = vmatmul.mubr.bf16.gmra.mxu0 %v880
    %v1035 = vpop.f32.mrf.mxu0
    %v1036 = vadd.f32 %v903, %v1035
    %v1037 = vpop.f32.mrf.mxu0
    %v1038 = vpop.f32.mrf.mxu0
    %v1039 = vadd.f32 %v903, %v1038
    %v1040 = vpop.f32.mrf.mxu0
    %1041 = vmatprep.mubr.bf16.mxu0 0
    %1042 = vmatmul.mubr.bf16.gmra.mxu0 %v881
    %v1043 = vpop.f32.mrf.mxu0
    %v1044 = vadd.f32 %v903, %v1043
    %v1045 = vpop.f32.mrf.mxu0
    %v1046 = vpop.f32.mrf.mxu0
    %v1047 = vadd.f32 %v903, %v1046
    %v1048 = vpop.f32.mrf.mxu0
    %1049 = vdwg.mxu0
    %v1050 = vmul.f32 %v988, 0.5
    %v1051 = vmul.f32 %v991, 0.5
    %v1052 = vmul.f32 %v996, 0.5
    %v1053 = vmul.f32 %v999, 0.5
    %v1054 = vmul.f32 %v1004, 0.5
    %v1055 = vmul.f32 %v1007, 0.5
    %v1056 = vmul.f32 %v1012, 0.5
    %v1057 = vmul.f32 %v1015, 0.5
    %v1058 = vmul.f32 %v1020, 0.5
    %v1059 = vmul.f32 %v1023, 0.5
    %v1060 = vmul.f32 %v1028, 0.5
    %v1061 = vmul.f32 %v1031, 0.5
    %v1062 = vmul.f32 %v1036, 0.5
    %v1063 = vmul.f32 %v1039, 0.5
    %v1064 = vmul.f32 %v1044, 0.5
    %v1065 = vmul.f32 %v1047, 0.5
    %v1066 = vmul.f32 %v988, 0.70710677
    %v1067 = vmul.f32 %v991, 0.70710677
    %v1068 = vmul.f32 %v996, 0.70710677
    %v1069 = vmul.f32 %v999, 0.70710677
    %v1070 = vmul.f32 %v1004, 0.70710677
    %v1071 = vmul.f32 %v1007, 0.70710677
    %v1072 = vmul.f32 %v1012, 0.70710677
    %v1073 = vmul.f32 %v1015, 0.70710677
    %v1074 = vmul.f32 %v1020, 0.70710677
    %v1075 = vmul.f32 %v1023, 0.70710677
    %v1076 = vmul.f32 %v1028, 0.70710677
    %v1077 = vmul.f32 %v1031, 0.70710677
    %v1078 = vmul.f32 %v1036, 0.70710677
    %v1079 = vmul.f32 %v1039, 0.70710677
    %v1080 = vmul.f32 %v1044, 0.70710677
    %v1081 = vmul.f32 %v1047, 0.70710677
    %v1082 = verf.f32.pop %v1066
    %v1083 = verf.f32.pop %v1067
    %v1084 = verf.f32.pop %v1068
    %v1085 = verf.f32.pop %v1069
    %v1086 = verf.f32.pop %v1070
    %v1087 = verf.f32.pop %v1071
    %v1088 = verf.f32.pop %v1072
    %v1089 = verf.f32.pop %v1073
    %v1090 = verf.f32.pop %v1074
    %v1091 = verf.f32.pop %v1075
    %v1092 = verf.f32.pop %v1076
    %v1093 = verf.f32.pop %v1077
    %v1094 = verf.f32.pop %v1078
    %v1095 = verf.f32.pop %v1079
    %v1096 = verf.f32.pop %v1080
    %v1097 = verf.f32.pop %v1081
    %v1098 = vadd.f32 %v1082, 1.0
    %v1099 = vadd.f32 %v1083, 1.0
    %v1100 = vadd.f32 %v1084, 1.0
    %v1101 = vadd.f32 %v1085, 1.0
    %v1102 = vadd.f32 %v1086, 1.0
    %v1103 = vadd.f32 %v1087, 1.0
    %v1104 = vadd.f32 %v1088, 1.0
    %v1105 = vadd.f32 %v1089, 1.0
    %v1106 = vadd.f32 %v1090, 1.0
    %v1107 = vadd.f32 %v1091, 1.0
    %v1108 = vadd.f32 %v1092, 1.0
    %v1109 = vadd.f32 %v1093, 1.0
    %v1110 = vadd.f32 %v1094, 1.0
    %v1111 = vadd.f32 %v1095, 1.0
    %v1112 = vadd.f32 %v1096, 1.0
    %v1113 = vadd.f32 %v1097, 1.0
    %v1114 = vmul.f32 %v1050, %v1098
    %v1115 = vmul.f32 %v1051, %v1099
    %v1116 = vmul.f32 %v1052, %v1100
    %v1117 = vmul.f32 %v1053, %v1101
    %v1118 = vmul.f32 %v1054, %v1102
    %v1119 = vmul.f32 %v1055, %v1103
    %v1120 = vmul.f32 %v1056, %v1104
    %v1121 = vmul.f32 %v1057, %v1105
    %v1122 = vmul.f32 %v1058, %v1106
    %v1123 = vmul.f32 %v1059, %v1107
    %v1124 = vmul.f32 %v1060, %v1108
    %v1125 = vmul.f32 %v1061, %v1109
    %v1126 = vmul.f32 %v1062, %v1110
    %v1127 = vmul.f32 %v1063, %v1111
    %v1128 = vmul.f32 %v1064, %v1112
    %v1129 = vmul.f32 %v1065, %v1113
    %v1130 = vpack.c.bf16 %v1115, %v1114
    %v1131 = vpack.c.bf16 %v1117, %v1116
    %v1132 = vpack.c.bf16 %v1119, %v1118
    %v1133 = vpack.c.bf16 %v1121, %v1120
    %v1134 = vpack.c.bf16 %v1123, %v1122
    %v1135 = vpack.c.bf16 %v1125, %v1124
    %v1136 = vpack.c.bf16 %v1127, %v1126
    %v1137 = vpack.c.bf16 %v1129, %v1128
    %v1138 = vld [vmem:[#allocation11] sm:$0xf]
    %v1139 = vld [vmem:[#allocation11 + $0x4] sm:$0xf]
    %v1140 = vld [vmem:[#allocation11 + $0x8] sm:$0xf]
    %v1141 = vld [vmem:[#allocation11 + $0xc] sm:$0xf]
    %v1142 = vld [vmem:[#allocation11 + $0x10] sm:$0xf]
    %v1143 = vld [vmem:[#allocation11 + $0x14] sm:$0xf]
    %v1144 = vld [vmem:[#allocation11 + $0x18] sm:$0xf]
    %v1145 = vld [vmem:[#allocation11 + $0x1c] sm:$0xf]
    %v1146 = vld [vmem:[#allocation11 + $0x20] sm:$0xf]
    %v1147 = vld [vmem:[#allocation11 + $0x24] sm:$0xf]
    %v1148 = vld [vmem:[#allocation11 + $0x28] sm:$0xf]
    %v1149 = vld [vmem:[#allocation11 + $0x2c] sm:$0xf]
    %v1150 = vld [vmem:[#allocation11 + $0x30] sm:$0xf]
    %v1151 = vld [vmem:[#allocation11 + $0x34] sm:$0xf]
    %v1152 = vld [vmem:[#allocation11 + $0x38] sm:$0xf]
    %v1153 = vld [vmem:[#allocation11 + $0x3c] sm:$0xf]
    %v1154 = vld [vmem:[%s7] sm:$0x1]
    %v1156 = vlaneseq
    %v1157 = vshrl.u32 %v1156, 7
    %v1158 = vsub.s32 0, %v1157
    %v1159 = vrot.slane %v1154, %v1158
    %v1177 = vunpack.c.l.b16 %v1138
    %v1178 = vunpack.c.l.b16 %v1139
    %v1179 = vunpack.c.l.b16 %v1140
    %v1180 = vunpack.c.l.b16 %v1141
    %v1181 = vunpack.c.l.b16 %v1142
    %v1182 = vunpack.c.l.b16 %v1143
    %v1183 = vunpack.c.l.b16 %v1144
    %v1184 = vunpack.c.l.b16 %v1145
    %v1185 = vunpack.c.l.b16 %v1146
    %v1186 = vunpack.c.l.b16 %v1147
    %v1187 = vunpack.c.l.b16 %v1148
    %v1188 = vunpack.c.l.b16 %v1149
    %v1189 = vunpack.c.l.b16 %v1150
    %v1190 = vunpack.c.l.b16 %v1151
    %v1191 = vunpack.c.l.b16 %v1152
    %v1192 = vunpack.c.l.b16 %v1153
    %v1193 = vpack.c.b16 %v1178, %v1177
    %v1194 = vpack.c.b16 %v1180, %v1179
    %v1195 = vpack.c.b16 %v1182, %v1181
    %v1196 = vpack.c.b16 %v1184, %v1183
    %v1197 = vpack.c.b16 %v1186, %v1185
    %v1198 = vpack.c.b16 %v1188, %v1187
    %v1199 = vpack.c.b16 %v1190, %v1189
    %v1200 = vpack.c.b16 %v1192, %v1191
    %1209 = vmatprep.subr.bf16.mxu0 0
    %1210 = vmatpush1.bf16.msra.mxu0 %v1200
    %1211 = vmatprep.subr.bf16.mxu0 0
    %1212 = vmatpush1.bf16.msra.mxu0 %v1199
    %1213 = vmatprep.subr.bf16.mxu0 0
    %1214 = vmatpush1.bf16.msra.mxu0 %v1198
    %1215 = vmatprep.subr.bf16.mxu0 0
    %1216 = vmatpush1.bf16.msra.mxu0 %v1197
    %1217 = vmatprep.subr.bf16.mxu0 0
    %1218 = vmatpush1.bf16.msra.mxu0 %v1196
    %1219 = vmatprep.subr.bf16.mxu0 0
    %1220 = vmatpush1.bf16.msra.mxu0 %v1195
    %1221 = vmatprep.subr.bf16.mxu0 0
    %1222 = vmatpush1.bf16.msra.mxu0 %v1194
    %1223 = vmatprep.subr.bf16.mxu0 0
    %1224 = vmatpush1.bf16.msra.mxu0 %v1193
    %1225 = vmatprep.subr.bf16.mxu0 0
    %1226 = vmatpush2.bf16.msra.mxu0 0
    %1227 = vmatprep.subr.bf16.mxu0 0
    %1228 = vmatpush2.bf16.msra.mxu0 0
    %1229 = vmatprep.subr.bf16.mxu0 0
    %1230 = vmatpush2.bf16.msra.mxu0 0
    %1231 = vmatprep.subr.bf16.mxu0 0
    %1232 = vmatpush2.bf16.msra.mxu0 0
    %1233 = vmatprep.subr.bf16.mxu0 0
    %1234 = vmatpush2.bf16.msra.mxu0 0
    %1235 = vmatprep.subr.bf16.mxu0 0
    %1236 = vmatpush2.bf16.msra.mxu0 0
    %1237 = vmatprep.subr.bf16.mxu0 0
    %1238 = vmatpush2.bf16.msra.mxu0 0
    %1239 = vmatprep.subr.bf16.mxu0 0
    %1240 = vmatpush2.bf16.msra.mxu0 0
    %1241 = vmatprep.mubr.bf16.mxu0 0
    %1242 = vmatmul.mubr.bf16.gmra.mxu0 %v1130
    %v1243 = vpop.f32.mrf.mxu0
    %v1244 = vadd.f32 %v1159, %v1243
    %v1245 = vpop.f32.mrf.mxu0
    %v1246 = vpop.f32.mrf.mxu0
    %v1247 = vadd.f32 %v1159, %v1246
    %v1248 = vpop.f32.mrf.mxu0
    %1249 = vmatprep.mubr.bf16.mxu0 0
    %1250 = vmatmul.mubr.bf16.gmra.mxu0 %v1131
    %v1251 = vpop.f32.mrf.mxu0
    %v1252 = vadd.f32 %v1159, %v1251
    %v1253 = vpop.f32.mrf.mxu0
    %v1254 = vpop.f32.mrf.mxu0
    %v1255 = vadd.f32 %v1159, %v1254
    %v1256 = vpop.f32.mrf.mxu0
    %1257 = vmatprep.mubr.bf16.mxu0 0
    %1258 = vmatmul.mubr.bf16.gmra.mxu0 %v1132
    %v1259 = vpop.f32.mrf.mxu0
    %v1260 = vadd.f32 %v1159, %v1259
    %v1261 = vpop.f32.mrf.mxu0
    %v1262 = vpop.f32.mrf.mxu0
    %v1263 = vadd.f32 %v1159, %v1262
    %v1264 = vpop.f32.mrf.mxu0
    %1265 = vmatprep.mubr.bf16.mxu0 0
    %1266 = vmatmul.mubr.bf16.gmra.mxu0 %v1133
    %v1267 = vpop.f32.mrf.mxu0
    %v1268 = vadd.f32 %v1159, %v1267
    %v1269 = vpop.f32.mrf.mxu0
    %v1270 = vpop.f32.mrf.mxu0
    %v1271 = vadd.f32 %v1159, %v1270
    %v1272 = vpop.f32.mrf.mxu0
    %1273 = vmatprep.mubr.bf16.mxu0 0
    %1274 = vmatmul.mubr.bf16.gmra.mxu0 %v1134
    %v1275 = vpop.f32.mrf.mxu0
    %v1276 = vadd.f32 %v1159, %v1275
    %v1277 = vpop.f32.mrf.mxu0
    %v1278 = vpop.f32.mrf.mxu0
    %v1279 = vadd.f32 %v1159, %v1278
    %v1280 = vpop.f32.mrf.mxu0
    %1281 = vmatprep.mubr.bf16.mxu0 0
    %1282 = vmatmul.mubr.bf16.gmra.mxu0 %v1135
    %v1283 = vpop.f32.mrf.mxu0
    %v1284 = vadd.f32 %v1159, %v1283
    %v1285 = vpop.f32.mrf.mxu0
    %v1286 = vpop.f32.mrf.mxu0
    %v1287 = vadd.f32 %v1159, %v1286
    %v1288 = vpop.f32.mrf.mxu0
    %1289 = vmatprep.mubr.bf16.mxu0 0
    %1290 = vmatmul.mubr.bf16.gmra.mxu0 %v1136
    %v1291 = vpop.f32.mrf.mxu0
    %v1292 = vadd.f32 %v1159, %v1291
    %v1293 = vpop.f32.mrf.mxu0
    %v1294 = vpop.f32.mrf.mxu0
    %v1295 = vadd.f32 %v1159, %v1294
    %v1296 = vpop.f32.mrf.mxu0
    %1297 = vmatprep.mubr.bf16.mxu0 0
    %1298 = vmatmul.mubr.bf16.gmra.mxu0 %v1137
    %v1299 = vpop.f32.mrf.mxu0
    %v1300 = vadd.f32 %v1159, %v1299
    %v1301 = vpop.f32.mrf.mxu0
    %v1302 = vpop.f32.mrf.mxu0
    %v1303 = vadd.f32 %v1159, %v1302
    %v1304 = vpop.f32.mrf.mxu0
    %1305 = vdwg.mxu0
    %v1306 = vadd.f32 %v1244, %v812
    %v1307 = vadd.f32 %v1247, %v815
    %v1308 = vadd.f32 %v1252, %v820
    %v1309 = vadd.f32 %v1255, %v823
    %v1310 = vadd.f32 %v1260, %v828
    %v1311 = vadd.f32 %v1263, %v831
    %v1312 = vadd.f32 %v1268, %v836
    %v1313 = vadd.f32 %v1271, %v839
    %v1314 = vadd.f32 %v1276, %v844
    %v1315 = vadd.f32 %v1279, %v847
    %v1316 = vadd.f32 %v1284, %v852
    %v1317 = vadd.f32 %v1287, %v855
    %v1318 = vadd.f32 %v1292, %v860
    %v1319 = vadd.f32 %v1295, %v863
    %v1320 = vadd.f32 %v1300, %v868
    %v1321 = vadd.f32 %v1303, %v871
    %1322 = vst [vmem:[#allocation13] sm:$0xff] %v1306
    %1323 = vst [vmem:[#allocation13 + $0x8] sm:$0xff] %v1307
    %1324 = vst [vmem:[#allocation13 + $0x10] sm:$0xff] %v1308
    %1325 = vst [vmem:[#allocation13 + $0x18] sm:$0xff] %v1309
    %1326 = vst [vmem:[#allocation13 + $0x20] sm:$0xff] %v1310
    %1327 = vst [vmem:[#allocation13 + $0x28] sm:$0xff] %v1311
    %1328 = vst [vmem:[#allocation13 + $0x30] sm:$0xff] %v1312
    %1329 = vst [vmem:[#allocation13 + $0x38] sm:$0xff] %v1313
    %1330 = vst [vmem:[#allocation13 + $0x40] sm:$0xff] %v1314
    %1331 = vst [vmem:[#allocation13 + $0x48] sm:$0xff] %v1315
    %1332 = vst [vmem:[#allocation13 + $0x50] sm:$0xff] %v1316
    %1333 = vst [vmem:[#allocation13 + $0x58] sm:$0xff] %v1317
    %1334 = vst [vmem:[#allocation13 + $0x60] sm:$0xff] %v1318
    %1335 = vst [vmem:[#allocation13 + $0x68] sm:$0xff] %v1319
    %1336 = vst [vmem:[#allocation13 + $0x70] sm:$0xff] %v1320
    %1337 = vst [vmem:[#allocation13 + $0x78] sm:$0xff] %v1321
    // Predicated region
    $region58: #{tpu_custom_call.1} parent=1 // pred_check
      _
    $region59: #{tpu_custom_call.1} parent=1 // pred_check_branch
      %1339 = sbr.rel (0) target = $region61
    $region60: #{tpu_custom_call.1} parent=1 // pred_region
      %s1341 = ssub.s32 2048, 2048
      %1342 = vsyncadd [#allocation4], %s1341
      %s1343 = sshll.u32 [#allocation13], 4
      %s1344 = int_to_ptr.vmem [resolvable:$true] %s1343
      %1349 = dma.vmem_to_hbm [thread:$0]  %s1344, 2048, %s8, [#allocation4], 128, 128, 8
    $region61: #{tpu_custom_call.1} parent=1 // pred_fallthru
      _
    // Predicated region
    $region62: #{tpu_custom_call.1} parent=1 // pred_check
      _
    $region63: #{tpu_custom_call.1} parent=1 // pred_check_branch
      %1351 = sbr.rel (0) target = $region65
    $region64: #{tpu_custom_call.1} parent=1 // pred_region
      %s1353 = ssub.s32 1024, 1024
      %1354 = vsyncadd [#allocation15], %s1353
      %s1355 = sshll.u32 [#allocation14], 4
      %s1356 = int_to_ptr.vmem [resolvable:$true] %s1355
      %1361 = dma.vmem_to_hbm [thread:$0]  %s1356, 1024, %s9, [#allocation15], 64, 64, 4
    $region65: #{tpu_custom_call.1} parent=1 // pred_fallthru
      _
    // Predicated region
    $region66: #{tpu_custom_call.1} parent=1 // pred_check
      _
    $region67: #{tpu_custom_call.1} parent=1 // pred_check_branch
      %1363 = sbr.rel (0) target = $region69
    $region68: #{tpu_custom_call.1} parent=1 // pred_region
      %1364 = dma.done [#allocation4], 2048
    $region69: #{tpu_custom_call.1} parent=1 // pred_fallthru
      _
    // Predicated region
    $region70: #{tpu_custom_call.1} parent=1 // pred_check
      _
    $region71: #{tpu_custom_call.1} parent=1 // pred_check_branch
      %1366 = sbr.rel (0) target = $region73
    $region72: #{tpu_custom_call.1} parent=1 // pred_region
      %1367 = dma.done [#allocation15], 1024
    $region73: #{tpu_custom_call.1} parent=1 // pred_fallthru
      _
    %1368 = vsyncpa [#allocation3], 1
    %1369 = vsyncpa [#allocation6], 1
    %1370 = vsyncpa [#allocation9], 1
    %1371 = vsyncpa [#allocation12], 1
    %1372 = vsyncpa [#allocation4], 1
    %1373 = vsyncpa [#allocation15], 1

</llo_original>
